<compile_context>
chip_gen: v6e
topology: v6e:2x2x1
jax: 0.10.0
libtpu: 0.0.40
codegen_flags: <defaults>
</compile_context>

<pallas_src>
import math
import functools
import numpy as np

import jax
import jax.numpy as jnp
from jax.experimental import pallas as pl
from jax.experimental.pallas import tpu as pltpu


def _residual_cnn_kernel(x_ref, mask_ref, avg_ref,
                         band1_ref, b1_ref, g1_ref, be1_ref,
                         band2_ref, b2_ref, g2_ref, be2_ref,
                         o_ref, *, eps):
    BT, CF = x_ref.shape
    K = band1_ref.shape[0]
    P = K // 2

    x = x_ref[...]                     # (B*T, C*F) f32, lanes = (channel, feat)
    avg = avg_ref[...]                 # (C*F, C*F) block-diag per-channel mean matrix

    def layer_norm(h, g_ref, b_ref):
        # CNNLayerNorm == LayerNorm over n_feats (per-channel lane group):
        # segmented mean / biased variance via one MXU matmul each.
        mu = jnp.dot(h, avg, preferred_element_type=jnp.float32)
        var = jnp.dot((h - mu) * (h - mu), avg, preferred_element_type=jnp.float32)
        return (h - mu) * jax.lax.rsqrt(var + eps) * g_ref[...] + b_ref[...]

    def gelu(h):
        # erf-based GELU (matches torch.nn.functional.gelu default), A&S 7.1.26
        # polynomial; the divide goes to the EUP (free co-issue slot).
        z = h * 0.7071067811865476
        az = jnp.abs(z)
        t = pl.reciprocal(1.0 + 0.3275911 * az, approx=True)
        poly = t * (0.254829592 + t * (-0.284496736 + t * (1.421413741
                 + t * (-1.453152027 + t * 1.061405429))))
        e = 1.0 - poly * jnp.exp(-az * az)
        erf = jnp.where(z >= 0.0, e, -e)
        return 0.5 * h * (1.0 + erf)

    def conv_same(h, band_ref, bias_ref):
        # stride-1 'same' Conv2d: one (BT, C*F) @ (C*F, C*F) block-banded MXU
        # matmul per time tap (bf16 operands, f32 accumulate).  Register
        # accumulation, bias added once, single output write by the caller.
        acc = None
        for j in range(K):
            dt = j - P
            p = h
            if dt != 0:
                # time shift = sublane roll (XLU) + one boundary-row mask
                # multiply on the whole packed slab.
                p = pltpu.roll(h, shift=(-dt) % BT, axis=0) * mask_ref[j]
            term = jnp.dot(p.astype(jnp.bfloat16), band_ref[j],
                           preferred_element_type=jnp.float32)
            acc = term if acc is None else acc + term
        return acc + bias_ref[...]

    h = gelu(layer_norm(x, g1_ref, be1_ref))
    # dropout1 / dropout2: identity (eval mode).
    # TODO(synk): training-mode dropout would need pltpu.prng_seed /
    # prng_random_bits; PyTorch's RNG stream cannot be matched anyway.
    h = conv_same(h, band1_ref, b1_ref)
    h = gelu(layer_norm(h, g2_ref, be2_ref))
    h = conv_same(h, band2_ref, b2_ref)
    # Residual from the pre-LN input; single lane-dense store.
    o_ref[...] = (h + x_ref[...]).astype(o_ref.dtype)


def _conv_band_matrices(w, n_feats):
    """(C_out, C_in, K, K) Conv2d weight -> K block-banded (C_in*F, C_out*F)
    matrices (one per time tap):

        band[j, ci*F+fi, co*F+fo] = w[co, ci, fi-fo+P, j]  if |fi-fo| <= P else 0

    so each tap's contraction (input channels + n_feats taps + n_feats zero
    padding) is a single MXU matmul.
    TODO(synk): storage scales as K*C^2*F^2 (an F^2/K-fold replication of the
    raw weights); for large C/F switch to an im2col (K*K*C_in, C_out) weight or
    build the bands in-kernel from the raw weights.
    """
    C_out, C_in, K, K2 = w.shape
    assert K == K2
    P = K // 2
    F = n_feats
    fi = jnp.arange(F)[:, None]
    fo = jnp.arange(F)[None, :]
    d = fi - fo + P                                              # (F, F)
    valid = (d >= 0) & (d < K)
    wg = w.astype(jnp.float32)[:, :, jnp.clip(d, 0, K - 1), :]   # (Co, Ci, F, F, K)
    wg = jnp.where(valid[None, None, :, :, None], wg, 0.0)
    band = jnp.transpose(wg, (4, 1, 2, 0, 3))                    # (K, Ci, F, Co, F)
    return band.reshape(K, C_in * F, C_out * F)


def residual_cnn_forward(x_nchw, params, *, kernel=3, stride=1):
    assert stride == 1, "residual add requires stride 1 (as in the model)"
    assert kernel % 2 == 1
    B, C, F, T = x_nchw.shape
    K, P = kernel, kernel // 2
    BT, CF = B * T, C * F

    w1, b1 = params["w1"], params["b1"]
    w2, b2 = params["w2"], params["b2"]
    g1, be1 = params["gamma1"], params["beta1"]
    g2, be2 = params["gamma2"], params["beta2"]
    assert w1.shape == (C, C, K, K) and w2.shape == (C, C, K, K)

    # Plain-JAX glue: NCHW (B,C,F,T) -> (B,T,C,F) -> packed (B*T, C*F).
    x_k = jnp.transpose(x_nchw, (0, 3, 1, 2)).reshape(BT, CF).astype(jnp.float32)

    # Block-banded per-tap conv weights, bf16 MXU operands.
    band1 = _conv_band_matrices(w1, F).astype(jnp.bfloat16)
    band2 = _conv_band_matrices(w2, F).astype(jnp.bfloat16)

    # Block-diagonal per-channel averaging matrix for the segmented LayerNorm.
    avg = jnp.kron(jnp.eye(C, dtype=jnp.float32),
                   jnp.ones((F, F), jnp.float32)) / F

    # Packed per-lane parameter rows (lane l = c*F + f).
    b1_k = jnp.repeat(b1.astype(jnp.float32), F).reshape(1, CF)
    b2_k = jnp.repeat(b2.astype(jnp.float32), F).reshape(1, CF)
    g1_k = jnp.tile(g1.astype(jnp.float32), C).reshape(1, CF)
    be1_k = jnp.tile(be1.astype(jnp.float32), C).reshape(1, CF)
    g2_k = jnp.tile(g2.astype(jnp.float32), C).reshape(1, CF)
    be2_k = jnp.tile(be2.astype(jnp.float32), C).reshape(1, CF)

    # Boundary-row validity masks for the +-P time taps (row = b*T + t).
    t_idx = jnp.arange(BT, dtype=jnp.int32) % T
    masks = jnp.stack(
        [((t_idx + (j - P) >= 0) & (t_idx + (j - P) < T)).astype(jnp.float32)
         for j in range(K)], axis=0).reshape(K, BT, 1)

    kernel_fn = functools.partial(_residual_cnn_kernel, eps=1e-5)

    def full_spec(shape):
        nd = len(shape)
        return pl.BlockSpec(shape, lambda i, _nd=nd: (0,) * _nd)

    out_k = pl.pallas_call(
        kernel_fn,
        out_shape=jax.ShapeDtypeStruct((BT, CF), jnp.float32),
        grid=(1,),
        in_specs=[
            full_spec((BT, CF)),        # x (packed)
            full_spec((K, BT, 1)),      # time-tap boundary masks
            full_spec((CF, CF)),        # LayerNorm averaging matrix
            full_spec((K, CF, CF)),     # conv1 banded weights (bf16)
            full_spec((1, CF)),         # conv1 bias
            full_spec((1, CF)),         # ln1 gamma
            full_spec((1, CF)),         # ln1 beta
            full_spec((K, CF, CF)),     # conv2 banded weights (bf16)
            full_spec((1, CF)),         # conv2 bias
            full_spec((1, CF)),         # ln2 gamma
            full_spec((1, CF)),         # ln2 beta
        ],
        out_specs=full_spec((BT, CF)),
        compiler_params=pltpu.CompilerParams(
            dimension_semantics=("arbitrary",)),
    )(x_k, masks, avg, band1, b1_k, g1_k, be1_k, band2, b2_k, g2_k, be2_k)

    # TODO(synk): for production shapes (long T, larger C/F) tile the time axis
    # into a "parallel" grid (2*P-row halo per tile, so v7x's 2 TensorCores are
    # used and blocks fit its 64 MiB VMEM) and set vmem_limit_bytes explicitly.
    return jnp.transpose(out_k.reshape(B, T, C, F), (0, 2, 3, 1))   # back to NCHW


def residual_cnn_reference(x, params, *, kernel=3):
    """Pure-JAX reference (XLA conv), NCHW, matching the PyTorch module in eval mode."""
    P = kernel // 2
    w1, b1 = params["w1"], params["b1"]
    w2, b2 = params["w2"], params["b2"]
    g1, be1 = params["gamma1"], params["beta1"]
    g2, be2 = params["gamma2"], params["beta2"]

    def cnn_layer_norm(h, g, b):
        ht = jnp.swapaxes(h, 2, 3)                         # (B, C, T, F)
        mu = ht.mean(-1, keepdims=True)
        var = ((ht - mu) ** 2).mean(-1, keepdims=True)
        out = (ht - mu) / jnp.sqrt(var + 1e-5) * g + b
        return jnp.swapaxes(out, 2, 3)

    def conv(h, w, b):
        y = jax.lax.conv_general_dilated(
            h, w, window_strides=(1, 1), padding=[(P, P), (P, P)],
            dimension_numbers=("NCHW", "OIHW", "NCHW"),
            precision=jax.lax.Precision.HIGHEST)
        return y + b[None, :, None, None]

    r = x
    h = jax.nn.gelu(cnn_layer_norm(x, g1, be1), approximate=False)
    h = conv(h, w1, b1)
    h = jax.nn.gelu(cnn_layer_norm(h, g2, be2), approximate=False)
    h = conv(h, w2, b2)
    return h + r


if __name__ == "__main__":
    # Small shapes: batch=2, in_channels=out_channels=4, n_feats=16, time=16, kernel=3.
    B, C, F, T, K = 2, 4, 16, 16, 3
    key = jax.random.PRNGKey(0)
    kx, kw1, kb1, kw2, kb2 = jax.random.split(key, 5)

    x = jax.random.normal(kx, (B, C, F, T), jnp.float32)   # NCHW (H=n_feats, W=time)

    # Deterministic init matching PyTorch defaults:
    #   Conv2d: kaiming-uniform -> U(-1/sqrt(fan_in), 1/sqrt(fan_in)); LayerNorm: gamma=1, beta=0.
    bound = 1.0 / math.sqrt(C * K * K)
    params = dict(
        w1=jax.random.uniform(kw1, (C, C, K, K), jnp.float32, -bound, bound),
        b1=jax.random.uniform(kb1, (C,), jnp.float32, -bound, bound),
        w2=jax.random.uniform(kw2, (C, C, K, K), jnp.float32, -bound, bound),
        b2=jax.random.uniform(kb2, (C,), jnp.float32, -bound, bound),
        gamma1=jnp.ones((F,), jnp.float32), beta1=jnp.zeros((F,), jnp.float32),
        gamma2=jnp.ones((F,), jnp.float32), beta2=jnp.zeros((F,), jnp.float32),
    )

    out = residual_cnn_forward(x, params, kernel=K, stride=1)
    out = jax.block_until_ready(out)
    assert out.shape == x.shape and out.dtype == jnp.float32

    ref = residual_cnn_reference(x, params, kernel=K)
    o_np, r_np = np.asarray(out), np.asarray(ref)
    if not np.allclose(o_np, r_np, rtol=2e-2, atol=2e-2):
        raise AssertionError(
            f"Pallas/reference mismatch, max|diff|={np.max(np.abs(o_np - r_np))}")

    print("KERNEL_OK")
</pallas_src>

<mosaic_0001>
module attributes {stable_mosaic.version = 11 : i64} {
  func.func @_residual_cnn_kernel(%arg0: i32, %arg1: memref<32x64xf32, #tpu.memory_space<vmem>>, %arg2: memref<3x32x1xf32, #tpu.memory_space<vmem>>, %arg3: memref<64x64xf32, #tpu.memory_space<vmem>>, %arg4: memref<3x64x64xbf16, #tpu.memory_space<vmem>>, %arg5: memref<1x64xf32, #tpu.memory_space<vmem>>, %arg6: memref<1x64xf32, #tpu.memory_space<vmem>>, %arg7: memref<1x64xf32, #tpu.memory_space<vmem>>, %arg8: memref<3x64x64xbf16, #tpu.memory_space<vmem>>, %arg9: memref<1x64xf32, #tpu.memory_space<vmem>>, %arg10: memref<1x64xf32, #tpu.memory_space<vmem>>, %arg11: memref<1x64xf32, #tpu.memory_space<vmem>>, %arg12: memref<32x64xf32, #tpu.memory_space<vmem>>) attributes {dimension_semantics = [#tpu.dimension_semantics<arbitrary>], iteration_bounds = array<i64: 1>, scalar_prefetch = 0 : i64, scratch_operands = 0 : i64, tpu.core_type = #tpu.core_type<tc>, window_params = [{pipeline_mode = #tpu.pipeline_mode<synchronous>, transform_indices = @transform_0, window_bounds = array<i64: 32, 64>}, {pipeline_mode = #tpu.pipeline_mode<synchronous>, transform_indices = @transform_1, window_bounds = array<i64: 3, 32, 1>}, {pipeline_mode = #tpu.pipeline_mode<synchronous>, transform_indices = @transform_2, window_bounds = array<i64: 64, 64>}, {pipeline_mode = #tpu.pipeline_mode<synchronous>, transform_indices = @transform_3, window_bounds = array<i64: 3, 64, 64>}, {pipeline_mode = #tpu.pipeline_mode<synchronous>, transform_indices = @transform_4, window_bounds = array<i64: 1, 64>}, {pipeline_mode = #tpu.pipeline_mode<synchronous>, transform_indices = @transform_5, window_bounds = array<i64: 1, 64>}, {pipeline_mode = #tpu.pipeline_mode<synchronous>, transform_indices = @transform_6, window_bounds = array<i64: 1, 64>}, {pipeline_mode = #tpu.pipeline_mode<synchronous>, transform_indices = @transform_7, window_bounds = array<i64: 3, 64, 64>}, {pipeline_mode = #tpu.pipeline_mode<synchronous>, transform_indices = @transform_8, window_bounds = array<i64: 1, 64>}, {pipeline_mode = #tpu.pipeline_mode<synchronous>, transform_indices = @transform_9, window_bounds = array<i64: 1, 64>}, {pipeline_mode = #tpu.pipeline_mode<synchronous>, transform_indices = @transform_10, window_bounds = array<i64: 1, 64>}, {pipeline_mode = #tpu.pipeline_mode<synchronous>, transform_indices = @transform_11, window_bounds = array<i64: 32, 64>}]} {
    %c0 = arith.constant 0 : index
    %c0_0 = arith.constant 0 : index
    %0 = vector.load %arg1[%c0, %c0_0] : memref<32x64xf32, #tpu.memory_space<vmem>>, vector<32x64xf32>
    %c0_1 = arith.constant 0 : index
    %c0_2 = arith.constant 0 : index
    %1 = vector.load %arg3[%c0_1, %c0_2] : memref<64x64xf32, #tpu.memory_space<vmem>>, vector<64x64xf32>
    %cst = arith.constant dense<0.000000e+00> : vector<32x64xf32>
    %2 = tpu.matmul %0, %1, %cst {dimension_numbers = #tpu.dot_dimension_numbers<[1], [0], [0], [1], [0, 0, 1, 1], [], []>} : vector<32x64xf32>, vector<64x64xf32>, vector<32x64xf32> -> vector<32x64xf32>
    %3 = arith.subf %0, %2 : vector<32x64xf32>
    %4 = arith.subf %0, %2 : vector<32x64xf32>
    %5 = arith.mulf %3, %4 : vector<32x64xf32>
    %cst_3 = arith.constant dense<0.000000e+00> : vector<32x64xf32>
    %6 = tpu.matmul %5, %1, %cst_3 {dimension_numbers = #tpu.dot_dimension_numbers<[1], [0], [0], [1], [0, 0, 1, 1], [], []>} : vector<32x64xf32>, vector<64x64xf32>, vector<32x64xf32> -> vector<32x64xf32>
    %7 = arith.subf %0, %2 : vector<32x64xf32>
    %cst_4 = arith.constant 9.99999974E-6 : f32
    %8 = vector.broadcast %cst_4 : f32 to vector<32x64xf32>
    %9 = arith.addf %6, %8 : vector<32x64xf32>
    %10 = math.rsqrt %9 : vector<32x64xf32>
    %11 = arith.mulf %7, %10 : vector<32x64xf32>
    %c0_5 = arith.constant 0 : index
    %c0_6 = arith.constant 0 : index
    %12 = vector.load %arg6[%c0_5, %c0_6] : memref<1x64xf32, #tpu.memory_space<vmem>>, vector<1x64xf32>
    %13 = vector.broadcast %12 : vector<1x64xf32> to vector<32x64xf32>
    %14 = arith.mulf %11, %13 : vector<32x64xf32>
    %c0_7 = arith.constant 0 : index
    %c0_8 = arith.constant 0 : index
    %15 = vector.load %arg7[%c0_7, %c0_8] : memref<1x64xf32, #tpu.memory_space<vmem>>, vector<1x64xf32>
    %16 = vector.broadcast %15 : vector<1x64xf32> to vector<32x64xf32>
    %17 = arith.addf %14, %16 : vector<32x64xf32>
    %cst_9 = arith.constant 0.707106769 : f32
    %18 = vector.broadcast %cst_9 : f32 to vector<32x64xf32>
    %19 = arith.mulf %17, %18 : vector<32x64xf32>
    %20 = math.absf %19 : vector<32x64xf32>
    %cst_10 = arith.constant 0.327591091 : f32
    %21 = vector.broadcast %cst_10 : f32 to vector<32x64xf32>
    %22 = arith.mulf %21, %20 : vector<32x64xf32>
    %cst_11 = arith.constant 1.000000e+00 : f32
    %23 = vector.broadcast %cst_11 : f32 to vector<32x64xf32>
    %24 = arith.addf %23, %22 : vector<32x64xf32>
    %25 = tpu.reciprocal %24 {approx = true} : vector<32x64xf32> -> vector<32x64xf32>
    %cst_12 = arith.constant 1.06140542 : f32
    %26 = vector.broadcast %cst_12 : f32 to vector<32x64xf32>
    %27 = arith.mulf %25, %26 : vector<32x64xf32>
    %cst_13 = arith.constant -1.45315206 : f32
    %28 = vector.broadcast %cst_13 : f32 to vector<32x64xf32>
    %29 = arith.addf %28, %27 : vector<32x64xf32>
    %30 = arith.mulf %25, %29 : vector<32x64xf32>
    %cst_14 = arith.constant 1.42141378 : f32
    %31 = vector.broadcast %cst_14 : f32 to vector<32x64xf32>
    %32 = arith.addf %31, %30 : vector<32x64xf32>
    %33 = arith.mulf %25, %32 : vector<32x64xf32>
    %cst_15 = arith.constant -0.284496725 : f32
    %34 = vector.broadcast %cst_15 : f32 to vector<32x64xf32>
    %35 = arith.addf %34, %33 : vector<32x64xf32>
    %36 = arith.mulf %25, %35 : vector<32x64xf32>
    %cst_16 = arith.constant 0.254829586 : f32
    %37 = vector.broadcast %cst_16 : f32 to vector<32x64xf32>
    %38 = arith.addf %37, %36 : vector<32x64xf32>
    %39 = arith.mulf %25, %38 : vector<32x64xf32>
    %cst_17 = arith.constant 0.000000e+00 : f32
    %40 = vector.broadcast %cst_17 : f32 to vector<32x64xf32>
    %41 = arith.subf %40, %20 : vector<32x64xf32>
    %42 = arith.mulf %41, %20 : vector<32x64xf32>
    %43 = math.exp %42 : vector<32x64xf32>
    %44 = arith.mulf %39, %43 : vector<32x64xf32>
    %cst_18 = arith.constant 1.000000e+00 : f32
    %45 = vector.broadcast %cst_18 : f32 to vector<32x64xf32>
    %46 = arith.subf %45, %44 : vector<32x64xf32>
    %cst_19 = arith.constant 0.000000e+00 : f32
    %47 = vector.broadcast %cst_19 : f32 to vector<32x64xf32>
    %48 = arith.cmpf oge, %19, %47 : vector<32x64xf32>
    %cst_20 = arith.constant 0.000000e+00 : f32
    %49 = vector.broadcast %cst_20 : f32 to vector<32x64xf32>
    %50 = arith.subf %49, %46 : vector<32x64xf32>
    %51 = arith.select %48, %46, %50 : vector<32x64xi1>, vector<32x64xf32>
    %cst_21 = arith.constant 5.000000e-01 : f32
    %52 = vector.broadcast %cst_21 : f32 to vector<32x64xf32>
    %53 = arith.mulf %52, %17 : vector<32x64xf32>
    %cst_22 = arith.constant 1.000000e+00 : f32
    %54 = vector.broadcast %cst_22 : f32 to vector<32x64xf32>
    %55 = arith.addf %54, %51 : vector<32x64xf32>
    %56 = arith.mulf %53, %55 : vector<32x64xf32>
    %c1_i32 = arith.constant 1 : i32
    %57 = tpu.dynamic_rotate %56 by %c1_i32 dim 0 : vector<32x64xf32>, i32 -> vector<32x64xf32>
    %c0_23 = arith.constant 0 : index
    %c0_24 = arith.constant 0 : index
    %c0_25 = arith.constant 0 : index
    %58 = vector.load %arg2[%c0_23, %c0_24, %c0_25] : memref<3x32x1xf32, #tpu.memory_space<vmem>>, vector<1x32x1xf32>
    %59 = vector.shape_cast %58 : vector<1x32x1xf32> to vector<32x1xf32>
    %60 = vector.broadcast %59 : vector<32x1xf32> to vector<32x64xf32>
    %61 = arith.mulf %57, %60 : vector<32x64xf32>
    %62 = arith.truncf %61 : vector<32x64xf32> to vector<32x64xbf16>
    %c0_26 = arith.constant 0 : index
    %c0_27 = arith.constant 0 : index
    %c0_28 = arith.constant 0 : index
    %63 = vector.load %arg4[%c0_26, %c0_27, %c0_28] : memref<3x64x64xbf16, #tpu.memory_space<vmem>>, vector<1x64x64xbf16>
    %64 = vector.shape_cast %63 : vector<1x64x64xbf16> to vector<64x64xbf16>
    %cst_29 = arith.constant dense<0.000000e+00> : vector<32x64xf32>
    %65 = tpu.matmul %62, %64, %cst_29 {dimension_numbers = #tpu.dot_dimension_numbers<[1], [0], [0], [1], [0, 0, 1, 1], [], []>} : vector<32x64xbf16>, vector<64x64xbf16>, vector<32x64xf32> -> vector<32x64xf32>
    %66 = arith.truncf %56 : vector<32x64xf32> to vector<32x64xbf16>
    %c1 = arith.constant 1 : index
    %c0_30 = arith.constant 0 : index
    %c0_31 = arith.constant 0 : index
    %67 = vector.load %arg4[%c1, %c0_30, %c0_31] : memref<3x64x64xbf16, #tpu.memory_space<vmem>>, vector<1x64x64xbf16>
    %68 = vector.shape_cast %67 : vector<1x64x64xbf16> to vector<64x64xbf16>
    %cst_32 = arith.constant dense<0.000000e+00> : vector<32x64xf32>
    %69 = tpu.matmul %66, %68, %cst_32 {dimension_numbers = #tpu.dot_dimension_numbers<[1], [0], [0], [1], [0, 0, 1, 1], [], []>} : vector<32x64xbf16>, vector<64x64xbf16>, vector<32x64xf32> -> vector<32x64xf32>
    %70 = arith.addf %65, %69 : vector<32x64xf32>
    %c31_i32 = arith.constant 31 : i32
    %71 = tpu.dynamic_rotate %56 by %c31_i32 dim 0 : vector<32x64xf32>, i32 -> vector<32x64xf32>
    %c2 = arith.constant 2 : index
    %c0_33 = arith.constant 0 : index
    %c0_34 = arith.constant 0 : index
    %72 = vector.load %arg2[%c2, %c0_33, %c0_34] : memref<3x32x1xf32, #tpu.memory_space<vmem>>, vector<1x32x1xf32>
    %73 = vector.shape_cast %72 : vector<1x32x1xf32> to vector<32x1xf32>
    %74 = vector.broadcast %73 : vector<32x1xf32> to vector<32x64xf32>
    %75 = arith.mulf %71, %74 : vector<32x64xf32>
    %76 = arith.truncf %75 : vector<32x64xf32> to vector<32x64xbf16>
    %c2_35 = arith.constant 2 : index
    %c0_36 = arith.constant 0 : index
    %c0_37 = arith.constant 0 : index
    %77 = vector.load %arg4[%c2_35, %c0_36, %c0_37] : memref<3x64x64xbf16, #tpu.memory_space<vmem>>, vector<1x64x64xbf16>
    %78 = vector.shape_cast %77 : vector<1x64x64xbf16> to vector<64x64xbf16>
    %cst_38 = arith.constant dense<0.000000e+00> : vector<32x64xf32>
    %79 = tpu.matmul %76, %78, %cst_38 {dimension_numbers = #tpu.dot_dimension_numbers<[1], [0], [0], [1], [0, 0, 1, 1], [], []>} : vector<32x64xbf16>, vector<64x64xbf16>, vector<32x64xf32> -> vector<32x64xf32>
    %80 = arith.addf %70, %79 : vector<32x64xf32>
    %c0_39 = arith.constant 0 : index
    %c0_40 = arith.constant 0 : index
    %81 = vector.load %arg5[%c0_39, %c0_40] : memref<1x64xf32, #tpu.memory_space<vmem>>, vector<1x64xf32>
    %82 = vector.broadcast %81 : vector<1x64xf32> to vector<32x64xf32>
    %83 = arith.addf %80, %82 : vector<32x64xf32>
    %cst_41 = arith.constant dense<0.000000e+00> : vector<32x64xf32>
    %84 = tpu.matmul %83, %1, %cst_41 {dimension_numbers = #tpu.dot_dimension_numbers<[1], [0], [0], [1], [0, 0, 1, 1], [], []>} : vector<32x64xf32>, vector<64x64xf32>, vector<32x64xf32> -> vector<32x64xf32>
    %85 = arith.subf %83, %84 : vector<32x64xf32>
    %86 = arith.subf %83, %84 : vector<32x64xf32>
    %87 = arith.mulf %85, %86 : vector<32x64xf32>
    %cst_42 = arith.constant dense<0.000000e+00> : vector<32x64xf32>
    %88 = tpu.matmul %87, %1, %cst_42 {dimension_numbers = #tpu.dot_dimension_numbers<[1], [0], [0], [1], [0, 0, 1, 1], [], []>} : vector<32x64xf32>, vector<64x64xf32>, vector<32x64xf32> -> vector<32x64xf32>
    %89 = arith.subf %83, %84 : vector<32x64xf32>
    %cst_43 = arith.constant 9.99999974E-6 : f32
    %90 = vector.broadcast %cst_43 : f32 to vector<32x64xf32>
    %91 = arith.addf %88, %90 : vector<32x64xf32>
    %92 = math.rsqrt %91 : vector<32x64xf32>
    %93 = arith.mulf %89, %92 : vector<32x64xf32>
    %c0_44 = arith.constant 0 : index
    %c0_45 = arith.constant 0 : index
    %94 = vector.load %arg10[%c0_44, %c0_45] : memref<1x64xf32, #tpu.memory_space<vmem>>, vector<1x64xf32>
    %95 = vector.broadcast %94 : vector<1x64xf32> to vector<32x64xf32>
    %96 = arith.mulf %93, %95 : vector<32x64xf32>
    %c0_46 = arith.constant 0 : index
    %c0_47 = arith.constant 0 : index
    %97 = vector.load %arg11[%c0_46, %c0_47] : memref<1x64xf32, #tpu.memory_space<vmem>>, vector<1x64xf32>
    %98 = vector.broadcast %97 : vector<1x64xf32> to vector<32x64xf32>
    %99 = arith.addf %96, %98 : vector<32x64xf32>
    %cst_48 = arith.constant 0.707106769 : f32
    %100 = vector.broadcast %cst_48 : f32 to vector<32x64xf32>
    %101 = arith.mulf %99, %100 : vector<32x64xf32>
    %102 = math.absf %101 : vector<32x64xf32>
    %cst_49 = arith.constant 0.327591091 : f32
    %103 = vector.broadcast %cst_49 : f32 to vector<32x64xf32>
    %104 = arith.mulf %103, %102 : vector<32x64xf32>
    %cst_50 = arith.constant 1.000000e+00 : f32
    %105 = vector.broadcast %cst_50 : f32 to vector<32x64xf32>
    %106 = arith.addf %105, %104 : vector<32x64xf32>
    %107 = tpu.reciprocal %106 {approx = true} : vector<32x64xf32> -> vector<32x64xf32>
    %cst_51 = arith.constant 1.06140542 : f32
    %108 = vector.broadcast %cst_51 : f32 to vector<32x64xf32>
    %109 = arith.mulf %107, %108 : vector<32x64xf32>
    %cst_52 = arith.constant -1.45315206 : f32
    %110 = vector.broadcast %cst_52 : f32 to vector<32x64xf32>
    %111 = arith.addf %110, %109 : vector<32x64xf32>
    %112 = arith.mulf %107, %111 : vector<32x64xf32>
    %cst_53 = arith.constant 1.42141378 : f32
    %113 = vector.broadcast %cst_53 : f32 to vector<32x64xf32>
    %114 = arith.addf %113, %112 : vector<32x64xf32>
    %115 = arith.mulf %107, %114 : vector<32x64xf32>
    %cst_54 = arith.constant -0.284496725 : f32
    %116 = vector.broadcast %cst_54 : f32 to vector<32x64xf32>
    %117 = arith.addf %116, %115 : vector<32x64xf32>
    %118 = arith.mulf %107, %117 : vector<32x64xf32>
    %cst_55 = arith.constant 0.254829586 : f32
    %119 = vector.broadcast %cst_55 : f32 to vector<32x64xf32>
    %120 = arith.addf %119, %118 : vector<32x64xf32>
    %121 = arith.mulf %107, %120 : vector<32x64xf32>
    %cst_56 = arith.constant 0.000000e+00 : f32
    %122 = vector.broadcast %cst_56 : f32 to vector<32x64xf32>
    %123 = arith.subf %122, %102 : vector<32x64xf32>
    %124 = arith.mulf %123, %102 : vector<32x64xf32>
    %125 = math.exp %124 : vector<32x64xf32>
    %126 = arith.mulf %121, %125 : vector<32x64xf32>
    %cst_57 = arith.constant 1.000000e+00 : f32
    %127 = vector.broadcast %cst_57 : f32 to vector<32x64xf32>
    %128 = arith.subf %127, %126 : vector<32x64xf32>
    %cst_58 = arith.constant 0.000000e+00 : f32
    %129 = vector.broadcast %cst_58 : f32 to vector<32x64xf32>
    %130 = arith.cmpf oge, %101, %129 : vector<32x64xf32>
    %cst_59 = arith.constant 0.000000e+00 : f32
    %131 = vector.broadcast %cst_59 : f32 to vector<32x64xf32>
    %132 = arith.subf %131, %128 : vector<32x64xf32>
    %133 = arith.select %130, %128, %132 : vector<32x64xi1>, vector<32x64xf32>
    %cst_60 = arith.constant 5.000000e-01 : f32
    %134 = vector.broadcast %cst_60 : f32 to vector<32x64xf32>
    %135 = arith.mulf %134, %99 : vector<32x64xf32>
    %cst_61 = arith.constant 1.000000e+00 : f32
    %136 = vector.broadcast %cst_61 : f32 to vector<32x64xf32>
    %137 = arith.addf %136, %133 : vector<32x64xf32>
    %138 = arith.mulf %135, %137 : vector<32x64xf32>
    %c1_i32_62 = arith.constant 1 : i32
    %139 = tpu.dynamic_rotate %138 by %c1_i32_62 dim 0 : vector<32x64xf32>, i32 -> vector<32x64xf32>
    %c0_63 = arith.constant 0 : index
    %c0_64 = arith.constant 0 : index
    %c0_65 = arith.constant 0 : index
    %140 = vector.load %arg2[%c0_63, %c0_64, %c0_65] : memref<3x32x1xf32, #tpu.memory_space<vmem>>, vector<1x32x1xf32>
    %141 = vector.shape_cast %140 : vector<1x32x1xf32> to vector<32x1xf32>
    %142 = vector.broadcast %141 : vector<32x1xf32> to vector<32x64xf32>
    %143 = arith.mulf %139, %142 : vector<32x64xf32>
    %144 = arith.truncf %143 : vector<32x64xf32> to vector<32x64xbf16>
    %c0_66 = arith.constant 0 : index
    %c0_67 = arith.constant 0 : index
    %c0_68 = arith.constant 0 : index
    %145 = vector.load %arg8[%c0_66, %c0_67, %c0_68] : memref<3x64x64xbf16, #tpu.memory_space<vmem>>, vector<1x64x64xbf16>
    %146 = vector.shape_cast %145 : vector<1x64x64xbf16> to vector<64x64xbf16>
    %cst_69 = arith.constant dense<0.000000e+00> : vector<32x64xf32>
    %147 = tpu.matmul %144, %146, %cst_69 {dimension_numbers = #tpu.dot_dimension_numbers<[1], [0], [0], [1], [0, 0, 1, 1], [], []>} : vector<32x64xbf16>, vector<64x64xbf16>, vector<32x64xf32> -> vector<32x64xf32>
    %148 = arith.truncf %138 : vector<32x64xf32> to vector<32x64xbf16>
    %c1_70 = arith.constant 1 : index
    %c0_71 = arith.constant 0 : index
    %c0_72 = arith.constant 0 : index
    %149 = vector.load %arg8[%c1_70, %c0_71, %c0_72] : memref<3x64x64xbf16, #tpu.memory_space<vmem>>, vector<1x64x64xbf16>
    %150 = vector.shape_cast %149 : vector<1x64x64xbf16> to vector<64x64xbf16>
    %cst_73 = arith.constant dense<0.000000e+00> : vector<32x64xf32>
    %151 = tpu.matmul %148, %150, %cst_73 {dimension_numbers = #tpu.dot_dimension_numbers<[1], [0], [0], [1], [0, 0, 1, 1], [], []>} : vector<32x64xbf16>, vector<64x64xbf16>, vector<32x64xf32> -> vector<32x64xf32>
    %152 = arith.addf %147, %151 : vector<32x64xf32>
    %c31_i32_74 = arith.constant 31 : i32
    %153 = tpu.dynamic_rotate %138 by %c31_i32_74 dim 0 : vector<32x64xf32>, i32 -> vector<32x64xf32>
    %c2_75 = arith.constant 2 : index
    %c0_76 = arith.constant 0 : index
    %c0_77 = arith.constant 0 : index
    %154 = vector.load %arg2[%c2_75, %c0_76, %c0_77] : memref<3x32x1xf32, #tpu.memory_space<vmem>>, vector<1x32x1xf32>
    %155 = vector.shape_cast %154 : vector<1x32x1xf32> to vector<32x1xf32>
    %156 = vector.broadcast %155 : vector<32x1xf32> to vector<32x64xf32>
    %157 = arith.mulf %153, %156 : vector<32x64xf32>
    %158 = arith.truncf %157 : vector<32x64xf32> to vector<32x64xbf16>
    %c2_78 = arith.constant 2 : index
    %c0_79 = arith.constant 0 : index
    %c0_80 = arith.constant 0 : index
    %159 = vector.load %arg8[%c2_78, %c0_79, %c0_80] : memref<3x64x64xbf16, #tpu.memory_space<vmem>>, vector<1x64x64xbf16>
    %160 = vector.shape_cast %159 : vector<1x64x64xbf16> to vector<64x64xbf16>
    %cst_81 = arith.constant dense<0.000000e+00> : vector<32x64xf32>
    %161 = tpu.matmul %158, %160, %cst_81 {dimension_numbers = #tpu.dot_dimension_numbers<[1], [0], [0], [1], [0, 0, 1, 1], [], []>} : vector<32x64xbf16>, vector<64x64xbf16>, vector<32x64xf32> -> vector<32x64xf32>
    %162 = arith.addf %152, %161 : vector<32x64xf32>
    %c0_82 = arith.constant 0 : index
    %c0_83 = arith.constant 0 : index
    %163 = vector.load %arg9[%c0_82, %c0_83] : memref<1x64xf32, #tpu.memory_space<vmem>>, vector<1x64xf32>
    %164 = vector.broadcast %163 : vector<1x64xf32> to vector<32x64xf32>
    %165 = arith.addf %162, %164 : vector<32x64xf32>
    %c0_84 = arith.constant 0 : index
    %c0_85 = arith.constant 0 : index
    %166 = vector.load %arg1[%c0_84, %c0_85] : memref<32x64xf32, #tpu.memory_space<vmem>>, vector<32x64xf32>
    %167 = arith.addf %165, %166 : vector<32x64xf32>
    %c0_86 = arith.constant 0 : index
    %c0_87 = arith.constant 0 : index
    %168 = vector.load %arg12[%c0_86, %c0_87] : memref<32x64xf32, #tpu.memory_space<vmem>>, vector<32x64xf32>
    tpu.vector_store %arg12[%c0_86, %c0_87], %167 {strides = array<i32>} : memref<32x64xf32, #tpu.memory_space<vmem>>, vector<32x64xf32>,
    return
  }
  func.func @transform_0(%arg0: i32) -> (i32, i32) {
    %c0_i32 = arith.constant 0 : i32
    %c0_i32_0 = arith.constant 0 : i32
    %c0_i32_1 = arith.constant 0 : i32
    return %c0_i32, %c0_i32_0 : i32, i32
  }
  func.func @transform_1(%arg0: i32) -> (i32, i32, i32) {
    %c0_i32 = arith.constant 0 : i32
    %c0_i32_0 = arith.constant 0 : i32
    %c0_i32_1 = arith.constant 0 : i32
    %c0_i32_2 = arith.constant 0 : i32
    return %c0_i32, %c0_i32_0, %c0_i32_1 : i32, i32, i32
  }
  func.func @transform_2(%arg0: i32) -> (i32, i32) {
    %c0_i32 = arith.constant 0 : i32
    %c0_i32_0 = arith.constant 0 : i32
    %c0_i32_1 = arith.constant 0 : i32
    return %c0_i32, %c0_i32_0 : i32, i32
  }
  func.func @transform_3(%arg0: i32) -> (i32, i32, i32) {
    %c0_i32 = arith.constant 0 : i32
    %c0_i32_0 = arith.constant 0 : i32
    %c0_i32_1 = arith.constant 0 : i32
    %c0_i32_2 = arith.constant 0 : i32
    return %c0_i32, %c0_i32_0, %c0_i32_1 : i32, i32, i32
  }
  func.func @transform_4(%arg0: i32) -> (i32, i32) {
    %c0_i32 = arith.constant 0 : i32
    %c0_i32_0 = arith.constant 0 : i32
    %c0_i32_1 = arith.constant 0 : i32
    return %c0_i32, %c0_i32_0 : i32, i32
  }
  func.func @transform_5(%arg0: i32) -> (i32, i32) {
    %c0_i32 = arith.constant 0 : i32
    %c0_i32_0 = arith.constant 0 : i32
    %c0_i32_1 = arith.constant 0 : i32
    return %c0_i32, %c0_i32_0 : i32, i32
  }
  func.func @transform_6(%arg0: i32) -> (i32, i32) {
    %c0_i32 = arith.constant 0 : i32
    %c0_i32_0 = arith.constant 0 : i32
    %c0_i32_1 = arith.constant 0 : i32
    return %c0_i32, %c0_i32_0 : i32, i32
  }
  func.func @transform_7(%arg0: i32) -> (i32, i32, i32) {
    %c0_i32 = arith.constant 0 : i32
    %c0_i32_0 = arith.constant 0 : i32
    %c0_i32_1 = arith.constant 0 : i32
    %c0_i32_2 = arith.constant 0 : i32
    return %c0_i32, %c0_i32_0, %c0_i32_1 : i32, i32, i32
  }
  func.func @transform_8(%arg0: i32) -> (i32, i32) {
    %c0_i32 = arith.constant 0 : i32
    %c0_i32_0 = arith.constant 0 : i32
    %c0_i32_1 = arith.constant 0 : i32
    return %c0_i32, %c0_i32_0 : i32, i32
  }
  func.func @transform_9(%arg0: i32) -> (i32, i32) {
    %c0_i32 = arith.constant 0 : i32
    %c0_i32_0 = arith.constant 0 : i32
    %c0_i32_1 = arith.constant 0 : i32
    return %c0_i32, %c0_i32_0 : i32, i32
  }
  func.func @transform_10(%arg0: i32) -> (i32, i32) {
    %c0_i32 = arith.constant 0 : i32
    %c0_i32_0 = arith.constant 0 : i32
    %c0_i32_1 = arith.constant 0 : i32
    return %c0_i32, %c0_i32_0 : i32, i32
  }
  func.func @transform_11(%arg0: i32) -> (i32, i32) {
    %c0_i32 = arith.constant 0 : i32
    %c0_i32_0 = arith.constant 0 : i32
    %c0_i32_1 = arith.constant 0 : i32
    return %c0_i32, %c0_i32_0 : i32, i32
  }
}

</mosaic_0001>

<llo_original>
// kernel: tpu_custom_call.1
$region0: #{tpu_custom_call.1}
  #allocation0 [shape = 'u32[]', space=smem, size = 0x4, offset = 0x4, fixed_abs, tag = 'smem constant byte address 0x4 - core index']
  #allocation1 [shape = 'u32[144,128]{1,0:T(1,128)}', space=vmem, size = 0x12000, scoped, tag = 'internal scratch']
  %s0 = inlined_call_operand.hbm [shape: f32[32,64], index: 0, kind: input, shape index: {}]
  %s1 = inlined_call_operand.vmem [shape: f32[3,32,1], index: 1, kind: input, shape index: {}]
  %s2 = inlined_call_operand.hbm [shape: f32[64,64], index: 2, kind: input, shape index: {}]
  %s3 = inlined_call_operand.vmem [shape: bf16[3,64,64], index: 3, kind: input, shape index: {}]
  %s4 = inlined_call_operand.vmem [shape: f32[1,64], index: 4, kind: input, shape index: {}]
  %s5 = inlined_call_operand.vmem [shape: f32[1,64], index: 5, kind: input, shape index: {}]
  %s6 = inlined_call_operand.vmem [shape: f32[1,64], index: 6, kind: input, shape index: {}]
  %s7 = inlined_call_operand.hbm [shape: bf16[3,64,64], index: 7, kind: input, shape index: {}]
  %s8 = inlined_call_operand.vmem [shape: f32[1,64], index: 8, kind: input, shape index: {}]
  %s9 = inlined_call_operand.vmem [shape: f32[1,64], index: 9, kind: input, shape index: {}]
  %s10 = inlined_call_operand.vmem [shape: f32[1,64], index: 10, kind: input, shape index: {}]
  %s11 = inlined_call_operand.hbm [shape: f32[32,64], index: 11, kind: output, shape index: {}]
  %s12 = sld [smem:[#allocation0]]
  $region66: #{tpu_custom_call.1} parent=0
    _
  %s14 = ssub.s32 1, %s12
  %s15 = scalar_select 0, %s14, %s12
  $region1: #{tpu_custom_call.1} parent=0
    #allocation2 [shape = 'u8[16384]{0}', space=vmem, size = 0x4000, scoped, tag = 'input window, operand 0, single buffered']
    #allocation3 [shape = 's32[1]{0}', space=sflag, size = 0x4, scoped, tag = 'scoped memory for tpu_custom_call.1']
    #allocation4 [shape = 's32[1]{0}', space=sflag, size = 0x4, scoped, tag = 'scoped memory for tpu_custom_call.1']
    #allocation5 [shape = 'u8[32768]{0}', space=vmem, size = 0x8000, scoped, tag = 'input window, operand 2, single buffered']
    #allocation6 [shape = 's32[1]{0}', space=sflag, size = 0x4, scoped, tag = 'scoped memory for tpu_custom_call.1']
    #allocation7 [shape = 'u8[49152]{0}', space=vmem, size = 0xc000, scoped, tag = 'input window, operand 7, single buffered']
    #allocation8 [shape = 'u8[16384]{0}', space=vmem, size = 0x4000, scoped, tag = 'output window, operand 0, single buffered']
    %16 = vsyncpa [#allocation3], 0
    %17 = vsyncpa [#allocation6], 0
    %18 = vsyncpa [#allocation4], 0
    // Predicated region
    $region2: #{tpu_custom_call.1} parent=1 // pred_check
      _
    $region3: #{tpu_custom_call.1} parent=1 // pred_check_branch
      %20 = sbr.rel (0) target = $region5
    $region4: #{tpu_custom_call.1} parent=1 // pred_region
      %s22 = ssub.s32 512, 512
      %23 = vsyncadd [#allocation3], %s22
      %s24 = sshll.u32 [#allocation2], 4
      %s25 = int_to_ptr.vmem [resolvable:$true] %s24
      %30 = dma.hbm_to_vmem [thread:$0]  %s0, 512, %s25, [#allocation3], 128, 128, 8
    $region5: #{tpu_custom_call.1} parent=1 // pred_fallthru
      _
    // Predicated region
    $region6: #{tpu_custom_call.1} parent=1 // pred_check
      _
    $region7: #{tpu_custom_call.1} parent=1 // pred_check_branch
      %32 = sbr.rel (0) target = $region9
    $region8: #{tpu_custom_call.1} parent=1 // pred_region
      _
    $region9: #{tpu_custom_call.1} parent=1 // pred_fallthru
      _
    // Predicated region
    $region10: #{tpu_custom_call.1} parent=1 // pred_check
      _
    $region11: #{tpu_custom_call.1} parent=1 // pred_check_branch
      %34 = sbr.rel (0) target = $region13
    $region12: #{tpu_custom_call.1} parent=1 // pred_region
      %s36 = ssub.s32 1024, 1024
      %37 = vsyncadd [#allocation6], %s36
      %s38 = sshll.u32 [#allocation5], 4
      %s39 = int_to_ptr.vmem [resolvable:$true] %s38
      %44 = dma.hbm_to_vmem [thread:$0]  %s2, 1024, %s39, [#allocation6], 128, 128, 8
    $region13: #{tpu_custom_call.1} parent=1 // pred_fallthru
      _
    // Predicated region
    $region14: #{tpu_custom_call.1} parent=1 // pred_check
      _
    $region15: #{tpu_custom_call.1} parent=1 // pred_check_branch
      %46 = sbr.rel (0) target = $region17
    $region16: #{tpu_custom_call.1} parent=1 // pred_region
      _
    $region17: #{tpu_custom_call.1} parent=1 // pred_fallthru
      _
    // Predicated region
    $region18: #{tpu_custom_call.1} parent=1 // pred_check
      _
    $region19: #{tpu_custom_call.1} parent=1 // pred_check_branch
      %48 = sbr.rel (0) target = $region21
    $region20: #{tpu_custom_call.1} parent=1 // pred_region
      _
    $region21: #{tpu_custom_call.1} parent=1 // pred_fallthru
      _
    // Predicated region
    $region22: #{tpu_custom_call.1} parent=1 // pred_check
      _
    $region23: #{tpu_custom_call.1} parent=1 // pred_check_branch
      %50 = sbr.rel (0) target = $region25
    $region24: #{tpu_custom_call.1} parent=1 // pred_region
      _
    $region25: #{tpu_custom_call.1} parent=1 // pred_fallthru
      _
    // Predicated region
    $region26: #{tpu_custom_call.1} parent=1 // pred_check
      _
    $region27: #{tpu_custom_call.1} parent=1 // pred_check_branch
      %52 = sbr.rel (0) target = $region29
    $region28: #{tpu_custom_call.1} parent=1 // pred_region
      _
    $region29: #{tpu_custom_call.1} parent=1 // pred_fallthru
      _
    // Predicated region
    $region30: #{tpu_custom_call.1} parent=1 // pred_check
      _
    $region31: #{tpu_custom_call.1} parent=1 // pred_check_branch
      %54 = sbr.rel (0) target = $region33
    $region32: #{tpu_custom_call.1} parent=1 // pred_region
      %s56 = ssub.s32 1536, 1536
      %57 = vsyncadd [#allocation6], %s56
      %s58 = sshll.u32 [#allocation7], 4
      %s59 = int_to_ptr.vmem [resolvable:$true] %s58
      %64 = dma.hbm_to_vmem [thread:$0]  %s7, 1536, %s59, [#allocation6], 64, 64, 4
    $region33: #{tpu_custom_call.1} parent=1 // pred_fallthru
      _
    // Predicated region
    $region34: #{tpu_custom_call.1} parent=1 // pred_check
      _
    $region35: #{tpu_custom_call.1} parent=1 // pred_check_branch
      %66 = sbr.rel (0) target = $region37
    $region36: #{tpu_custom_call.1} parent=1 // pred_region
      _
    $region37: #{tpu_custom_call.1} parent=1 // pred_fallthru
      _
    // Predicated region
    $region38: #{tpu_custom_call.1} parent=1 // pred_check
      _
    $region39: #{tpu_custom_call.1} parent=1 // pred_check_branch
      %68 = sbr.rel (0) target = $region41
    $region40: #{tpu_custom_call.1} parent=1 // pred_region
      _
    $region41: #{tpu_custom_call.1} parent=1 // pred_fallthru
      _
    // Predicated region
    $region42: #{tpu_custom_call.1} parent=1 // pred_check
      _
    $region43: #{tpu_custom_call.1} parent=1 // pred_check_branch
      %70 = sbr.rel (0) target = $region45
    $region44: #{tpu_custom_call.1} parent=1 // pred_region
      _
    $region45: #{tpu_custom_call.1} parent=1 // pred_fallthru
      _
    // Predicated region
    $region46: #{tpu_custom_call.1} parent=1 // pred_check
      _
    $region47: #{tpu_custom_call.1} parent=1 // pred_check_branch
      %72 = sbr.rel (0) target = $region49
    $region48: #{tpu_custom_call.1} parent=1 // pred_region
      %73 = dma.done [#allocation3], 512
    $region49: #{tpu_custom_call.1} parent=1 // pred_fallthru
      _
    // Predicated region
    $region50: #{tpu_custom_call.1} parent=1 // pred_check
      _
    $region51: #{tpu_custom_call.1} parent=1 // pred_check_branch
      %75 = sbr.rel (0) target = $region53
    $region52: #{tpu_custom_call.1} parent=1 // pred_region
      %76 = dma.done [#allocation6], 1024
    $region53: #{tpu_custom_call.1} parent=1 // pred_fallthru
      _
    // Predicated region
    $region54: #{tpu_custom_call.1} parent=1 // pred_check
      _
    $region55: #{tpu_custom_call.1} parent=1 // pred_check_branch
      %78 = sbr.rel (0) target = $region57
    $region56: #{tpu_custom_call.1} parent=1 // pred_region
      %79 = dma.done [#allocation6], 1536
    $region57: #{tpu_custom_call.1} parent=1 // pred_fallthru
      _
    %v81 = vld [vmem:[#allocation2] sm:$0xff]
    %v82 = vld [vmem:[#allocation2 + $0x8] sm:$0xff]
    %v83 = vld [vmem:[#allocation2 + $0x10] sm:$0xff]
    %v84 = vld [vmem:[#allocation2 + $0x18] sm:$0xff]
    %v85 = vld [vmem:[#allocation5] sm:$0xff]
    %v86 = vld [vmem:[#allocation5 + $0x8] sm:$0xff]
    %v87 = vld [vmem:[#allocation5 + $0x10] sm:$0xff]
    %v88 = vld [vmem:[#allocation5 + $0x18] sm:$0xff]
    %v89 = vld [vmem:[#allocation5 + $0x20] sm:$0xff]
    %v90 = vld [vmem:[#allocation5 + $0x28] sm:$0xff]
    %v91 = vld [vmem:[#allocation5 + $0x30] sm:$0xff]
    %v92 = vld [vmem:[#allocation5 + $0x38] sm:$0xff]
    %vm93 = vcmask 523264
    %v95 = vsel %vm93, %v81, 0
    %v98 = vsel %vm93, %v82, 0
    %v101 = vsel %vm93, %v83, 0
    %v104 = vsel %vm93, %v84, 0
    %106 = vmatprep.subr.mxu0 0.0
    %107 = vmatpush1.msra.mxu0 0.0
    %108 = vmatprep.subr.mxu0 0.0
    %109 = vmatpush1.msra.mxu0 0.0
    %110 = vmatprep.subr.mxu0 0.0
    %111 = vmatpush1.msra.mxu0 0.0
    %112 = vmatprep.subr.mxu0 0.0
    %113 = vmatpush1.msra.mxu0 0.0
    %114 = vmatprep.subr.mxu0 0.0
    %115 = vmatpush1.msra.mxu0 0.0
    %116 = vmatprep.subr.mxu0 0.0
    %117 = vmatpush1.msra.mxu0 0.0
    %118 = vmatprep.subr.mxu0 0.0
    %119 = vmatpush1.msra.mxu0 0.0
    %120 = vmatprep.subr.mxu0 0.0
    %121 = vmatpush1.msra.mxu0 0.0
    %122 = vmatprep.subr.mxu0 0.0
    %123 = vmatpush1.msra.mxu0 %v92
    %124 = vmatprep.subr.mxu0 0.0
    %125 = vmatpush1.msra.mxu0 %v91
    %126 = vmatprep.subr.mxu0 0.0
    %127 = vmatpush1.msra.mxu0 %v90
    %128 = vmatprep.subr.mxu0 0.0
    %129 = vmatpush1.msra.mxu0 %v89
    %130 = vmatprep.subr.mxu0 0.0
    %131 = vmatpush1.msra.mxu0 %v88
    %132 = vmatprep.subr.mxu0 0.0
    %133 = vmatpush1.msra.mxu0 %v87
    %134 = vmatprep.subr.mxu0 0.0
    %135 = vmatpush1.msra.mxu0 %v86
    %136 = vmatprep.subr.mxu0 0.0
    %137 = vmatpush1.msra.mxu0 %v85
    %138 = vmatprep.subr.mxu0 0.0
    %139 = vmatpush2.msra.mxu0 0.0
    %140 = vmatprep.subr.mxu0 0.0
    %141 = vmatpush2.msra.mxu0 0.0
    %142 = vmatprep.subr.mxu0 0.0
    %143 = vmatpush2.msra.mxu0 0.0
    %144 = vmatprep.subr.mxu0 0.0
    %145 = vmatpush2.msra.mxu0 0.0
    %146 = vmatprep.subr.mxu0 0.0
    %147 = vmatpush2.msra.mxu0 0.0
    %148 = vmatprep.subr.mxu0 0.0
    %149 = vmatpush2.msra.mxu0 0.0
    %150 = vmatprep.subr.mxu0 0.0
    %151 = vmatpush2.msra.mxu0 0.0
    %152 = vmatprep.subr.mxu0 0.0
    %153 = vmatpush2.msra.mxu0 0.0
    %154 = vmatprep.subr.mxu0 0.0
    %155 = vmatpush2.msra.mxu0 0.0
    %156 = vmatprep.subr.mxu0 0.0
    %157 = vmatpush2.msra.mxu0 0.0
    %158 = vmatprep.subr.mxu0 0.0
    %159 = vmatpush2.msra.mxu0 0.0
    %160 = vmatprep.subr.mxu0 0.0
    %161 = vmatpush2.msra.mxu0 0.0
    %162 = vmatprep.subr.mxu0 0.0
    %163 = vmatpush2.msra.mxu0 0.0
    %164 = vmatprep.subr.mxu0 0.0
    %165 = vmatpush2.msra.mxu0 0.0
    %166 = vmatprep.subr.mxu0 0.0
    %167 = vmatpush2.msra.mxu0 0.0
    %168 = vmatprep.subr.mxu0 0.0
    %169 = vmatpush2.msra.mxu0 0.0
    %170 = vmatprep.mubr.f32.mxu0 0.0
    %171 = vmatmul.mubr.f32.gmra.mxu0 %v95
    %v172 = vpop.f32.mrf.mxu0
    %v173 = vadd.f32 0.0, %v172
    %v174 = vpop.f32.mrf.mxu0
    %175 = vmatprep.mubr.f32.mxu0 0.0
    %176 = vmatmul.mubr.f32.gmra.mxu0 %v98
    %v177 = vpop.f32.mrf.mxu0
    %v178 = vadd.f32 0.0, %v177
    %v179 = vpop.f32.mrf.mxu0
    %180 = vmatprep.mubr.f32.mxu0 0.0
    %181 = vmatmul.mubr.f32.gmra.mxu0 %v101
    %v182 = vpop.f32.mrf.mxu0
    %v183 = vadd.f32 0.0, %v182
    %v184 = vpop.f32.mrf.mxu0
    %185 = vmatprep.mubr.f32.mxu0 0.0
    %186 = vmatmul.mubr.f32.gmra.mxu0 %v104
    %v187 = vpop.f32.mrf.mxu0
    %v188 = vadd.f32 0.0, %v187
    %v189 = vpop.f32.mrf.mxu0
    %190 = vdwg.mxu0
    %v191 = vsub.f32 %v81, %v173
    %v192 = vsub.f32 %v82, %v178
    %v193 = vsub.f32 %v83, %v183
    %v194 = vsub.f32 %v84, %v188
    %v195 = vmul.f32 %v191, %v191
    %v196 = vmul.f32 %v192, %v192
    %v197 = vmul.f32 %v193, %v193
    %v198 = vmul.f32 %v194, %v194
    %v200 = vsel %vm93, %v195, 0
    %v203 = vsel %vm93, %v196, 0
    %v206 = vsel %vm93, %v197, 0
    %v209 = vsel %vm93, %v198, 0
    %211 = vmatprep.subr.mxu0 0.0
    %212 = vmatpush1.msra.mxu0 0.0
    %213 = vmatprep.subr.mxu0 0.0
    %214 = vmatpush1.msra.mxu0 0.0
    %215 = vmatprep.subr.mxu0 0.0
    %216 = vmatpush1.msra.mxu0 0.0
    %217 = vmatprep.subr.mxu0 0.0
    %218 = vmatpush1.msra.mxu0 0.0
    %219 = vmatprep.subr.mxu0 0.0
    %220 = vmatpush1.msra.mxu0 0.0
    %221 = vmatprep.subr.mxu0 0.0
    %222 = vmatpush1.msra.mxu0 0.0
    %223 = vmatprep.subr.mxu0 0.0
    %224 = vmatpush1.msra.mxu0 0.0
    %225 = vmatprep.subr.mxu0 0.0
    %226 = vmatpush1.msra.mxu0 0.0
    %227 = vmatprep.subr.mxu0 0.0
    %228 = vmatpush1.msra.mxu0 %v92
    %229 = vmatprep.subr.mxu0 0.0
    %230 = vmatpush1.msra.mxu0 %v91
    %231 = vmatprep.subr.mxu0 0.0
    %232 = vmatpush1.msra.mxu0 %v90
    %233 = vmatprep.subr.mxu0 0.0
    %234 = vmatpush1.msra.mxu0 %v89
    %235 = vmatprep.subr.mxu0 0.0
    %236 = vmatpush1.msra.mxu0 %v88
    %237 = vmatprep.subr.mxu0 0.0
    %238 = vmatpush1.msra.mxu0 %v87
    %239 = vmatprep.subr.mxu0 0.0
    %240 = vmatpush1.msra.mxu0 %v86
    %241 = vmatprep.subr.mxu0 0.0
    %242 = vmatpush1.msra.mxu0 %v85
    %243 = vmatprep.subr.mxu0 0.0
    %244 = vmatpush2.msra.mxu0 0.0
    %245 = vmatprep.subr.mxu0 0.0
    %246 = vmatpush2.msra.mxu0 0.0
    %247 = vmatprep.subr.mxu0 0.0
    %248 = vmatpush2.msra.mxu0 0.0
    %249 = vmatprep.subr.mxu0 0.0
    %250 = vmatpush2.msra.mxu0 0.0
    %251 = vmatprep.subr.mxu0 0.0
    %252 = vmatpush2.msra.mxu0 0.0
    %253 = vmatprep.subr.mxu0 0.0
    %254 = vmatpush2.msra.mxu0 0.0
    %255 = vmatprep.subr.mxu0 0.0
    %256 = vmatpush2.msra.mxu0 0.0
    %257 = vmatprep.subr.mxu0 0.0
    %258 = vmatpush2.msra.mxu0 0.0
    %259 = vmatprep.subr.mxu0 0.0
    %260 = vmatpush2.msra.mxu0 0.0
    %261 = vmatprep.subr.mxu0 0.0
    %262 = vmatpush2.msra.mxu0 0.0
    %263 = vmatprep.subr.mxu0 0.0
    %264 = vmatpush2.msra.mxu0 0.0
    %265 = vmatprep.subr.mxu0 0.0
    %266 = vmatpush2.msra.mxu0 0.0
    %267 = vmatprep.subr.mxu0 0.0
    %268 = vmatpush2.msra.mxu0 0.0
    %269 = vmatprep.subr.mxu0 0.0
    %270 = vmatpush2.msra.mxu0 0.0
    %271 = vmatprep.subr.mxu0 0.0
    %272 = vmatpush2.msra.mxu0 0.0
    %273 = vmatprep.subr.mxu0 0.0
    %274 = vmatpush2.msra.mxu0 0.0
    %275 = vmatprep.mubr.f32.mxu0 0.0
    %276 = vmatmul.mubr.f32.gmra.mxu0 %v200
    %v277 = vpop.f32.mrf.mxu0
    %v278 = vadd.f32 1e-05, %v277
    %v279 = vpop.f32.mrf.mxu0
    %280 = vmatprep.mubr.f32.mxu0 0.0
    %281 = vmatmul.mubr.f32.gmra.mxu0 %v203
    %v282 = vpop.f32.mrf.mxu0
    %v283 = vadd.f32 1e-05, %v282
    %v284 = vpop.f32.mrf.mxu0
    %285 = vmatprep.mubr.f32.mxu0 0.0
    %286 = vmatmul.mubr.f32.gmra.mxu0 %v206
    %v287 = vpop.f32.mrf.mxu0
    %v288 = vadd.f32 1e-05, %v287
    %v289 = vpop.f32.mrf.mxu0
    %290 = vmatprep.mubr.f32.mxu0 0.0
    %291 = vmatmul.mubr.f32.gmra.mxu0 %v209
    %v292 = vpop.f32.mrf.mxu0
    %v293 = vadd.f32 1e-05, %v292
    %v294 = vpop.f32.mrf.mxu0
    %295 = vdwg.mxu0
    %v296 = vrsqrt.pop %v278
    %v297 = vrsqrt.pop %v283
    %v298 = vrsqrt.pop %v288
    %v299 = vrsqrt.pop %v293
    %v300 = vmul.f32 %v191, %v296
    %v301 = vmul.f32 %v192, %v297
    %v302 = vmul.f32 %v193, %v298
    %v303 = vmul.f32 %v194, %v299
    %v304 = vld [vmem:[%s5] sm:$0x1]
    %v306 = vlaneseq
    %v307 = vshrl.u32 %v306, 7
    %v308 = vsub.s32 0, %v307
    %v309 = vrot.slane %v304, %v308
    %v311 = vmul.f32 %v300, %v309
    %v312 = vmul.f32 %v301, %v309
    %v313 = vmul.f32 %v302, %v309
    %v314 = vmul.f32 %v303, %v309
    %v315 = vld [vmem:[%s6] sm:$0x1]
    %v317 = vlaneseq
    %v318 = vshrl.u32 %v317, 7
    %v319 = vsub.s32 0, %v318
    %v320 = vrot.slane %v315, %v319
    %v322 = vadd.f32 %v311, %v320
    %v323 = vadd.f32 %v312, %v320
    %v324 = vadd.f32 %v313, %v320
    %v325 = vadd.f32 %v314, %v320
    %v326 = vmul.f32 %v322, 0.70710677
    %v327 = vmul.f32 %v323, 0.70710677
    %v328 = vmul.f32 %v324, 0.70710677
    %v329 = vmul.f32 %v325, 0.70710677
    %v330 = vand.u32 2147483647, %v326
    %v331 = vand.u32 2147483647, %v327
    %v332 = vand.u32 2147483647, %v328
    %v333 = vand.u32 2147483647, %v329
    %v334 = vmul.f32 %v330, 0.3275911
    %v335 = vmul.f32 %v331, 0.3275911
    %v336 = vmul.f32 %v332, 0.3275911
    %v337 = vmul.f32 %v333, 0.3275911
    %v338 = vadd.f32 %v334, 1.0
    %v339 = vadd.f32 %v335, 1.0
    %v340 = vadd.f32 %v336, 1.0
    %v341 = vadd.f32 %v337, 1.0
    %v342 = vrcp.pop %v338
    %v343 = vrcp.pop %v339
    %v344 = vrcp.pop %v340
    %v345 = vrcp.pop %v341
    %v346 = vmul.f32 %v342, 1.0614054
    %v347 = vmul.f32 %v343, 1.0614054
    %v348 = vmul.f32 %v344, 1.0614054
    %v349 = vmul.f32 %v345, 1.0614054
    %v350 = vadd.f32 %v346, -1.4531521
    %v351 = vadd.f32 %v347, -1.4531521
    %v352 = vadd.f32 %v348, -1.4531521
    %v353 = vadd.f32 %v349, -1.4531521
    %v354 = vmul.f32 %v342, %v350
    %v355 = vmul.f32 %v343, %v351
    %v356 = vmul.f32 %v344, %v352
    %v357 = vmul.f32 %v345, %v353
    %v358 = vadd.f32 %v354, 1.4214138
    %v359 = vadd.f32 %v355, 1.4214138
    %v360 = vadd.f32 %v356, 1.4214138
    %v361 = vadd.f32 %v357, 1.4214138
    %v362 = vmul.f32 %v342, %v358
    %v363 = vmul.f32 %v343, %v359
    %v364 = vmul.f32 %v344, %v360
    %v365 = vmul.f32 %v345, %v361
    %v366 = vadd.f32 %v362, -0.28449672
    %v367 = vadd.f32 %v363, -0.28449672
    %v368 = vadd.f32 %v364, -0.28449672
    %v369 = vadd.f32 %v365, -0.28449672
    %v370 = vmul.f32 %v342, %v366
    %v371 = vmul.f32 %v343, %v367
    %v372 = vmul.f32 %v344, %v368
    %v373 = vmul.f32 %v345, %v369
    %v374 = vadd.f32 %v370, 0.2548296
    %v375 = vadd.f32 %v371, 0.2548296
    %v376 = vadd.f32 %v372, 0.2548296
    %v377 = vadd.f32 %v373, 0.2548296
    %v378 = vmul.f32 %v342, %v374
    %v379 = vmul.f32 %v343, %v375
    %v380 = vmul.f32 %v344, %v376
    %v381 = vmul.f32 %v345, %v377
    %v382 = vsub.f32 0.0, %v330
    %v383 = vsub.f32 0.0, %v331
    %v384 = vsub.f32 0.0, %v332
    %v385 = vsub.f32 0.0, %v333
    %v386 = vmul.f32 %v382, %v330
    %v387 = vmul.f32 %v383, %v331
    %v388 = vmul.f32 %v384, %v332
    %v389 = vmul.f32 %v385, %v333
    %v390 = vmul.f32 %v386, 1.442695
    %v391 = vpow.pop %v390
    %v392 = vmul.f32 %v387, 1.442695
    %v393 = vpow.pop %v392
    %v394 = vmul.f32 %v388, 1.442695
    %v395 = vpow.pop %v394
    %v396 = vmul.f32 %v389, 1.442695
    %v397 = vpow.pop %v396
    %v398 = vmul.f32 %v378, %v391
    %v399 = vmul.f32 %v379, %v393
    %v400 = vmul.f32 %v380, %v395
    %v401 = vmul.f32 %v381, %v397
    %v402 = vsub.f32 1.0, %v398
    %v403 = vsub.f32 1.0, %v399
    %v404 = vsub.f32 1.0, %v400
    %v405 = vsub.f32 1.0, %v401
    %vm406 = vcmp.ge.f32.partialorder %v326, 0.0
    %vm407 = vcmp.ge.f32.partialorder %v327, 0.0
    %vm408 = vcmp.ge.f32.partialorder %v328, 0.0
    %vm409 = vcmp.ge.f32.partialorder %v329, 0.0
    %v410 = vsub.f32 0.0, %v402
    %v411 = vsub.f32 0.0, %v403
    %v412 = vsub.f32 0.0, %v404
    %v413 = vsub.f32 0.0, %v405
    %v414 = vsel %vm406, %v402, %v410
    %v415 = vsel %vm407, %v403, %v411
    %v416 = vsel %vm408, %v404, %v412
    %v417 = vsel %vm409, %v405, %v413
    %v418 = vmul.f32 %v322, 0.5
    %v419 = vmul.f32 %v323, 0.5
    %v420 = vmul.f32 %v324, 0.5
    %v421 = vmul.f32 %v325, 0.5
    %v422 = vadd.f32 %v414, 1.0
    %v423 = vadd.f32 %v415, 1.0
    %v424 = vadd.f32 %v416, 1.0
    %v425 = vadd.f32 %v417, 1.0
    %v426 = vmul.f32 %v418, %v422
    %v427 = vmul.f32 %v419, %v423
    %v428 = vmul.f32 %v420, %v424
    %v429 = vmul.f32 %v421, %v425
    %v430 = vrot.slane %v426, 7
    %v431 = vrot.slane %v427, 7
    %v432 = vrot.slane %v428, 7
    %v433 = vrot.slane %v429, 7
    %v434 = vlaneseq
    %v435 = vshrl.u32 %v434, 7
    %vm436 = vcmp.lt.s32.totalorder %v435, 1
    %v437 = vsel %vm436, %v432, %v433
    %v438 = vsel %vm436, %v431, %v432
    %v439 = vsel %vm436, %v430, %v431
    %v440 = vsel %vm436, %v433, %v430
    %v441 = vld [vmem:[%s1] sm:$0xff]
    %v442 = vld [vmem:[%s1 + $0x8] sm:$0xff]
    %v443 = vld [vmem:[%s1 + $0x10] sm:$0xff]
    %v444 = vld [vmem:[%s1 + $0x18] sm:$0xff]
    %446 = vset.pattern.permute.xlu0 0
    %447 = vperm.xlu0 %446, %v441
    %v448 = vpop.permute.xlu0 %447
    %451 = vset.pattern.permute.xlu0 0
    %452 = vperm.xlu0 %451, %v442
    %v453 = vpop.permute.xlu0 %452
    %456 = vset.pattern.permute.xlu0 0
    %457 = vperm.xlu0 %456, %v443
    %v458 = vpop.permute.xlu0 %457
    %461 = vset.pattern.permute.xlu0 0
    %462 = vperm.xlu0 %461, %v444
    %v463 = vpop.permute.xlu0 %462
    %v465 = vmul.f32 %v440, %v448
    %v466 = vmul.f32 %v439, %v453
    %v467 = vmul.f32 %v438, %v458
    %v468 = vmul.f32 %v437, %v463
    %v469 = vpack.c.bf16 %v466, %v465
    %v470 = vpack.c.bf16 %v468, %v467
    %v471 = vld [vmem:[%s3] sm:$0xf]
    %v472 = vld [vmem:[%s3 + $0x4] sm:$0xf]
    %v473 = vld [vmem:[%s3 + $0x8] sm:$0xf]
    %v474 = vld [vmem:[%s3 + $0xc] sm:$0xf]
    %v475 = vld [vmem:[%s3 + $0x10] sm:$0xf]
    %v476 = vld [vmem:[%s3 + $0x14] sm:$0xf]
    %v477 = vld [vmem:[%s3 + $0x18] sm:$0xf]
    %v478 = vld [vmem:[%s3 + $0x1c] sm:$0xf]
    %v479 = vpack.c.bf16 %v427, %v426
    %v480 = vpack.c.bf16 %v429, %v428
    %s481 = scalar_lea.vmem %s3, 32
    %v482 = vld [vmem:[%s481] sm:$0xf]
    %v483 = vld [vmem:[%s481 + $0x4] sm:$0xf]
    %v484 = vld [vmem:[%s481 + $0x8] sm:$0xf]
    %v485 = vld [vmem:[%s481 + $0xc] sm:$0xf]
    %v486 = vld [vmem:[%s481 + $0x10] sm:$0xf]
    %v487 = vld [vmem:[%s481 + $0x14] sm:$0xf]
    %v488 = vld [vmem:[%s481 + $0x18] sm:$0xf]
    %v489 = vld [vmem:[%s481 + $0x1c] sm:$0xf]
    %v498 = vunpack.c.l.b16 %v482
    %v499 = vunpack.c.l.b16 %v483
    %v500 = vunpack.c.l.b16 %v484
    %v501 = vunpack.c.l.b16 %v485
    %v502 = vunpack.c.l.b16 %v486
    %v503 = vunpack.c.l.b16 %v487
    %v504 = vunpack.c.l.b16 %v488
    %v505 = vunpack.c.l.b16 %v489
    %v506 = vpack.c.b16 %v499, %v498
    %v507 = vpack.c.b16 %v501, %v500
    %v508 = vpack.c.b16 %v503, %v502
    %v509 = vpack.c.b16 %v505, %v504
    %v515 = vsel %vm93, %v479, 0
    %v518 = vsel %vm93, %v480, 0
    %520 = vmatprep.subr.bf16.mxu0 0
    %521 = vmatpush1.bf16.msra.mxu0 0
    %522 = vmatprep.subr.bf16.mxu0 0
    %523 = vmatpush1.bf16.msra.mxu0 0
    %524 = vmatprep.subr.bf16.mxu0 0
    %525 = vmatpush1.bf16.msra.mxu0 0
    %526 = vmatprep.subr.bf16.mxu0 0
    %527 = vmatpush1.bf16.msra.mxu0 0
    %528 = vmatprep.subr.bf16.mxu0 0
    %529 = vmatpush1.bf16.msra.mxu0 %v509
    %530 = vmatprep.subr.bf16.mxu0 0
    %531 = vmatpush1.bf16.msra.mxu0 %v508
    %532 = vmatprep.subr.bf16.mxu0 0
    %533 = vmatpush1.bf16.msra.mxu0 %v507
    %534 = vmatprep.subr.bf16.mxu0 0
    %535 = vmatpush1.bf16.msra.mxu0 %v506
    %536 = vmatprep.subr.bf16.mxu0 0
    %537 = vmatpush2.bf16.msra.mxu0 0
    %538 = vmatprep.subr.bf16.mxu0 0
    %539 = vmatpush2.bf16.msra.mxu0 0
    %540 = vmatprep.subr.bf16.mxu0 0
    %541 = vmatpush2.bf16.msra.mxu0 0
    %542 = vmatprep.subr.bf16.mxu0 0
    %543 = vmatpush2.bf16.msra.mxu0 0
    %544 = vmatprep.subr.bf16.mxu0 0
    %545 = vmatpush2.bf16.msra.mxu0 0
    %546 = vmatprep.subr.bf16.mxu0 0
    %547 = vmatpush2.bf16.msra.mxu0 0
    %548 = vmatprep.subr.bf16.mxu0 0
    %549 = vmatpush2.bf16.msra.mxu0 0
    %550 = vmatprep.subr.bf16.mxu0 0
    %551 = vmatpush2.bf16.msra.mxu0 0
    %552 = vmatprep.mubr.bf16.mxu0 0
    %553 = vmatmul.mubr.bf16.gmra.mxu0 %v515
    %v554 = vpop.f32.mrf.mxu0
    %v555 = vadd.f32 0.0, %v554
    %v556 = vpop.f32.mrf.mxu0
    %v557 = vpop.f32.mrf.mxu0
    %v558 = vadd.f32 0.0, %v557
    %v559 = vpop.f32.mrf.mxu0
    %560 = vmatprep.mubr.bf16.mxu0 0
    %561 = vmatmul.mubr.bf16.gmra.mxu0 %v518
    %v562 = vpop.f32.mrf.mxu0
    %v563 = vadd.f32 0.0, %v562
    %v564 = vpop.f32.mrf.mxu0
    %v565 = vpop.f32.mrf.mxu0
    %v566 = vadd.f32 0.0, %v565
    %v567 = vpop.f32.mrf.mxu0
    %568 = vdwg.mxu0
    %v577 = vunpack.c.l.b16 %v471
    %v578 = vunpack.c.l.b16 %v472
    %v579 = vunpack.c.l.b16 %v473
    %v580 = vunpack.c.l.b16 %v474
    %v581 = vunpack.c.l.b16 %v475
    %v582 = vunpack.c.l.b16 %v476
    %v583 = vunpack.c.l.b16 %v477
    %v584 = vunpack.c.l.b16 %v478
    %v585 = vpack.c.b16 %v578, %v577
    %v586 = vpack.c.b16 %v580, %v579
    %v587 = vpack.c.b16 %v582, %v581
    %v588 = vpack.c.b16 %v584, %v583
    %v594 = vsel %vm93, %v469, 0
    %v597 = vsel %vm93, %v470, 0
    %599 = vmatprep.subr.bf16.mxu0 0
    %600 = vmatpush1.bf16.msra.mxu0 0
    %601 = vmatprep.subr.bf16.mxu0 0
    %602 = vmatpush1.bf16.msra.mxu0 0
    %603 = vmatprep.subr.bf16.mxu0 0
    %604 = vmatpush1.bf16.msra.mxu0 0
    %605 = vmatprep.subr.bf16.mxu0 0
    %606 = vmatpush1.bf16.msra.mxu0 0
    %607 = vmatprep.subr.bf16.mxu0 0
    %608 = vmatpush1.bf16.msra.mxu0 %v588
    %609 = vmatprep.subr.bf16.mxu0 0
    %610 = vmatpush1.bf16.msra.mxu0 %v587
    %611 = vmatprep.subr.bf16.mxu0 0
    %612 = vmatpush1.bf16.msra.mxu0 %v586
    %613 = vmatprep.subr.bf16.mxu0 0
    %614 = vmatpush1.bf16.msra.mxu0 %v585
    %615 = vmatprep.subr.bf16.mxu0 0
    %616 = vmatpush2.bf16.msra.mxu0 0
    %617 = vmatprep.subr.bf16.mxu0 0
    %618 = vmatpush2.bf16.msra.mxu0 0
    %619 = vmatprep.subr.bf16.mxu0 0
    %620 = vmatpush2.bf16.msra.mxu0 0
    %621 = vmatprep.subr.bf16.mxu0 0
    %622 = vmatpush2.bf16.msra.mxu0 0
    %623 = vmatprep.subr.bf16.mxu0 0
    %624 = vmatpush2.bf16.msra.mxu0 0
    %625 = vmatprep.subr.bf16.mxu0 0
    %626 = vmatpush2.bf16.msra.mxu0 0
    %627 = vmatprep.subr.bf16.mxu0 0
    %628 = vmatpush2.bf16.msra.mxu0 0
    %629 = vmatprep.subr.bf16.mxu0 0
    %630 = vmatpush2.bf16.msra.mxu0 0
    %631 = vmatprep.mubr.bf16.mxu0 0
    %632 = vmatmul.mubr.bf16.gmra.mxu0 %v594
    %v633 = vpop.f32.mrf.mxu0
    %v634 = vadd.f32 %v555, %v633
    %v635 = vpop.f32.mrf.mxu0
    %v636 = vpop.f32.mrf.mxu0
    %v637 = vadd.f32 %v558, %v636
    %v638 = vpop.f32.mrf.mxu0
    %639 = vmatprep.mubr.bf16.mxu0 0
    %640 = vmatmul.mubr.bf16.gmra.mxu0 %v597
    %v641 = vpop.f32.mrf.mxu0
    %v642 = vadd.f32 %v563, %v641
    %v643 = vpop.f32.mrf.mxu0
    %v644 = vpop.f32.mrf.mxu0
    %v645 = vadd.f32 %v566, %v644
    %v646 = vpop.f32.mrf.mxu0
    %647 = vdwg.mxu0
    %v648 = vrot.slane %v426, 1
    %v649 = vrot.slane %v427, 1
    %v650 = vrot.slane %v428, 1
    %v651 = vrot.slane %v429, 1
    %vm652 = vcmp.lt.s32.totalorder %v435, 7
    %v653 = vsel %vm652, %v650, %v651
    %v654 = vsel %vm652, %v649, %v650
    %v655 = vsel %vm652, %v648, %v649
    %v656 = vsel %vm652, %v651, %v648
    %s657 = scalar_lea.vmem %s1, 64
    %v658 = vld [vmem:[%s657] sm:$0xff]
    %v659 = vld [vmem:[%s657 + $0x8] sm:$0xff]
    %v660 = vld [vmem:[%s657 + $0x10] sm:$0xff]
    %v661 = vld [vmem:[%s657 + $0x18] sm:$0xff]
    %663 = vset.pattern.permute.xlu0 0
    %664 = vperm.xlu0 %663, %v658
    %v665 = vpop.permute.xlu0 %664
    %668 = vset.pattern.permute.xlu0 0
    %669 = vperm.xlu0 %668, %v659
    %v670 = vpop.permute.xlu0 %669
    %673 = vset.pattern.permute.xlu0 0
    %674 = vperm.xlu0 %673, %v660
    %v675 = vpop.permute.xlu0 %674
    %678 = vset.pattern.permute.xlu0 0
    %679 = vperm.xlu0 %678, %v661
    %v680 = vpop.permute.xlu0 %679
    %v682 = vmul.f32 %v655, %v665
    %v683 = vmul.f32 %v654, %v670
    %v684 = vmul.f32 %v653, %v675
    %v685 = vmul.f32 %v656, %v680
    %v686 = vpack.c.bf16 %v683, %v682
    %v687 = vpack.c.bf16 %v685, %v684
    %s688 = scalar_lea.vmem %s3, 64
    %v689 = vld [vmem:[%s688] sm:$0xf]
    %v690 = vld [vmem:[%s688 + $0x4] sm:$0xf]
    %v691 = vld [vmem:[%s688 + $0x8] sm:$0xf]
    %v692 = vld [vmem:[%s688 + $0xc] sm:$0xf]
    %v693 = vld [vmem:[%s688 + $0x10] sm:$0xf]
    %v694 = vld [vmem:[%s688 + $0x14] sm:$0xf]
    %v695 = vld [vmem:[%s688 + $0x18] sm:$0xf]
    %v696 = vld [vmem:[%s688 + $0x1c] sm:$0xf]
    %v705 = vunpack.c.l.b16 %v689
    %v706 = vunpack.c.l.b16 %v690
    %v707 = vunpack.c.l.b16 %v691
    %v708 = vunpack.c.l.b16 %v692
    %v709 = vunpack.c.l.b16 %v693
    %v710 = vunpack.c.l.b16 %v694
    %v711 = vunpack.c.l.b16 %v695
    %v712 = vunpack.c.l.b16 %v696
    %v713 = vpack.c.b16 %v706, %v705
    %v714 = vpack.c.b16 %v708, %v707
    %v715 = vpack.c.b16 %v710, %v709
    %v716 = vpack.c.b16 %v712, %v711
    %v722 = vsel %vm93, %v686, 0
    %v725 = vsel %vm93, %v687, 0
    %727 = vmatprep.subr.bf16.mxu0 0
    %728 = vmatpush1.bf16.msra.mxu0 0
    %729 = vmatprep.subr.bf16.mxu0 0
    %730 = vmatpush1.bf16.msra.mxu0 0
    %731 = vmatprep.subr.bf16.mxu0 0
    %732 = vmatpush1.bf16.msra.mxu0 0
    %733 = vmatprep.subr.bf16.mxu0 0
    %734 = vmatpush1.bf16.msra.mxu0 0
    %735 = vmatprep.subr.bf16.mxu0 0
    %736 = vmatpush1.bf16.msra.mxu0 %v716
    %737 = vmatprep.subr.bf16.mxu0 0
    %738 = vmatpush1.bf16.msra.mxu0 %v715
    %739 = vmatprep.subr.bf16.mxu0 0
    %740 = vmatpush1.bf16.msra.mxu0 %v714
    %741 = vmatprep.subr.bf16.mxu0 0
    %742 = vmatpush1.bf16.msra.mxu0 %v713
    %743 = vmatprep.subr.bf16.mxu0 0
    %744 = vmatpush2.bf16.msra.mxu0 0
    %745 = vmatprep.subr.bf16.mxu0 0
    %746 = vmatpush2.bf16.msra.mxu0 0
    %747 = vmatprep.subr.bf16.mxu0 0
    %748 = vmatpush2.bf16.msra.mxu0 0
    %749 = vmatprep.subr.bf16.mxu0 0
    %750 = vmatpush2.bf16.msra.mxu0 0
    %751 = vmatprep.subr.bf16.mxu0 0
    %752 = vmatpush2.bf16.msra.mxu0 0
    %753 = vmatprep.subr.bf16.mxu0 0
    %754 = vmatpush2.bf16.msra.mxu0 0
    %755 = vmatprep.subr.bf16.mxu0 0
    %756 = vmatpush2.bf16.msra.mxu0 0
    %757 = vmatprep.subr.bf16.mxu0 0
    %758 = vmatpush2.bf16.msra.mxu0 0
    %759 = vmatprep.mubr.bf16.mxu0 0
    %760 = vmatmul.mubr.bf16.gmra.mxu0 %v722
    %v761 = vpop.f32.mrf.mxu0
    %v762 = vadd.f32 0.0, %v761
    %v763 = vpop.f32.mrf.mxu0
    %v764 = vpop.f32.mrf.mxu0
    %v765 = vadd.f32 0.0, %v764
    %v766 = vpop.f32.mrf.mxu0
    %767 = vmatprep.mubr.bf16.mxu0 0
    %768 = vmatmul.mubr.bf16.gmra.mxu0 %v725
    %v769 = vpop.f32.mrf.mxu0
    %v770 = vadd.f32 0.0, %v769
    %v771 = vpop.f32.mrf.mxu0
    %v772 = vpop.f32.mrf.mxu0
    %v773 = vadd.f32 0.0, %v772
    %v774 = vpop.f32.mrf.mxu0
    %775 = vdwg.mxu0
    %v776 = vadd.f32 %v634, %v762
    %v777 = vadd.f32 %v637, %v765
    %v778 = vadd.f32 %v642, %v770
    %v779 = vadd.f32 %v645, %v773
    %v780 = vld [vmem:[%s4] sm:$0x1]
    %v782 = vlaneseq
    %v783 = vshrl.u32 %v782, 7
    %v784 = vsub.s32 0, %v783
    %v785 = vrot.slane %v780, %v784
    %v787 = vadd.f32 %v776, %v785
    %v788 = vadd.f32 %v777, %v785
    %v789 = vadd.f32 %v778, %v785
    %v790 = vadd.f32 %v779, %v785
    %v792 = vsel %vm93, %v787, 0
    %v795 = vsel %vm93, %v788, 0
    %v798 = vsel %vm93, %v789, 0
    %v801 = vsel %vm93, %v790, 0
    %803 = vmatprep.subr.mxu0 0.0
    %804 = vmatpush1.msra.mxu0 0.0
    %805 = vmatprep.subr.mxu0 0.0
    %806 = vmatpush1.msra.mxu0 0.0
    %807 = vmatprep.subr.mxu0 0.0
    %808 = vmatpush1.msra.mxu0 0.0
    %809 = vmatprep.subr.mxu0 0.0
    %810 = vmatpush1.msra.mxu0 0.0
    %811 = vmatprep.subr.mxu0 0.0
    %812 = vmatpush1.msra.mxu0 0.0
    %813 = vmatprep.subr.mxu0 0.0
    %814 = vmatpush1.msra.mxu0 0.0
    %815 = vmatprep.subr.mxu0 0.0
    %816 = vmatpush1.msra.mxu0 0.0
    %817 = vmatprep.subr.mxu0 0.0
    %818 = vmatpush1.msra.mxu0 0.0
    %819 = vmatprep.subr.mxu0 0.0
    %820 = vmatpush1.msra.mxu0 %v92
    %821 = vmatprep.subr.mxu0 0.0
    %822 = vmatpush1.msra.mxu0 %v91
    %823 = vmatprep.subr.mxu0 0.0
    %824 = vmatpush1.msra.mxu0 %v90
    %825 = vmatprep.subr.mxu0 0.0
    %826 = vmatpush1.msra.mxu0 %v89
    %827 = vmatprep.subr.mxu0 0.0
    %828 = vmatpush1.msra.mxu0 %v88
    %829 = vmatprep.subr.mxu0 0.0
    %830 = vmatpush1.msra.mxu0 %v87
    %831 = vmatprep.subr.mxu0 0.0
    %832 = vmatpush1.msra.mxu0 %v86
    %833 = vmatprep.subr.mxu0 0.0
    %834 = vmatpush1.msra.mxu0 %v85
    %835 = vmatprep.subr.mxu0 0.0
    %836 = vmatpush2.msra.mxu0 0.0
    %837 = vmatprep.subr.mxu0 0.0
    %838 = vmatpush2.msra.mxu0 0.0
    %839 = vmatprep.subr.mxu0 0.0
    %840 = vmatpush2.msra.mxu0 0.0
    %841 = vmatprep.subr.mxu0 0.0
    %842 = vmatpush2.msra.mxu0 0.0
    %843 = vmatprep.subr.mxu0 0.0
    %844 = vmatpush2.msra.mxu0 0.0
    %845 = vmatprep.subr.mxu0 0.0
    %846 = vmatpush2.msra.mxu0 0.0
    %847 = vmatprep.subr.mxu0 0.0
    %848 = vmatpush2.msra.mxu0 0.0
    %849 = vmatprep.subr.mxu0 0.0
    %850 = vmatpush2.msra.mxu0 0.0
    %851 = vmatprep.subr.mxu0 0.0
    %852 = vmatpush2.msra.mxu0 0.0
    %853 = vmatprep.subr.mxu0 0.0
    %854 = vmatpush2.msra.mxu0 0.0
    %855 = vmatprep.subr.mxu0 0.0
    %856 = vmatpush2.msra.mxu0 0.0
    %857 = vmatprep.subr.mxu0 0.0
    %858 = vmatpush2.msra.mxu0 0.0
    %859 = vmatprep.subr.mxu0 0.0
    %860 = vmatpush2.msra.mxu0 0.0
    %861 = vmatprep.subr.mxu0 0.0
    %862 = vmatpush2.msra.mxu0 0.0
    %863 = vmatprep.subr.mxu0 0.0
    %864 = vmatpush2.msra.mxu0 0.0
    %865 = vmatprep.subr.mxu0 0.0
    %866 = vmatpush2.msra.mxu0 0.0
    %867 = vmatprep.mubr.f32.mxu0 0.0
    %868 = vmatmul.mubr.f32.gmra.mxu0 %v792
    %v869 = vpop.f32.mrf.mxu0
    %v870 = vadd.f32 0.0, %v869
    %v871 = vpop.f32.mrf.mxu0
    %872 = vmatprep.mubr.f32.mxu0 0.0
    %873 = vmatmul.mubr.f32.gmra.mxu0 %v795
    %v874 = vpop.f32.mrf.mxu0
    %v875 = vadd.f32 0.0, %v874
    %v876 = vpop.f32.mrf.mxu0
    %877 = vmatprep.mubr.f32.mxu0 0.0
    %878 = vmatmul.mubr.f32.gmra.mxu0 %v798
    %v879 = vpop.f32.mrf.mxu0
    %v880 = vadd.f32 0.0, %v879
    %v881 = vpop.f32.mrf.mxu0
    %882 = vmatprep.mubr.f32.mxu0 0.0
    %883 = vmatmul.mubr.f32.gmra.mxu0 %v801
    %v884 = vpop.f32.mrf.mxu0
    %v885 = vadd.f32 0.0, %v884
    %v886 = vpop.f32.mrf.mxu0
    %887 = vdwg.mxu0
    %v888 = vsub.f32 %v787, %v870
    %v889 = vsub.f32 %v788, %v875
    %v890 = vsub.f32 %v789, %v880
    %v891 = vsub.f32 %v790, %v885
    %v892 = vmul.f32 %v888, %v888
    %v893 = vmul.f32 %v889, %v889
    %v894 = vmul.f32 %v890, %v890
    %v895 = vmul.f32 %v891, %v891
    %v897 = vsel %vm93, %v892, 0
    %v900 = vsel %vm93, %v893, 0
    %v903 = vsel %vm93, %v894, 0
    %v906 = vsel %vm93, %v895, 0
    %908 = vmatprep.subr.mxu0 0.0
    %909 = vmatpush1.msra.mxu0 0.0
    %910 = vmatprep.subr.mxu0 0.0
    %911 = vmatpush1.msra.mxu0 0.0
    %912 = vmatprep.subr.mxu0 0.0
    %913 = vmatpush1.msra.mxu0 0.0
    %914 = vmatprep.subr.mxu0 0.0
    %915 = vmatpush1.msra.mxu0 0.0
    %916 = vmatprep.subr.mxu0 0.0
    %917 = vmatpush1.msra.mxu0 0.0
    %918 = vmatprep.subr.mxu0 0.0
    %919 = vmatpush1.msra.mxu0 0.0
    %920 = vmatprep.subr.mxu0 0.0
    %921 = vmatpush1.msra.mxu0 0.0
    %922 = vmatprep.subr.mxu0 0.0
    %923 = vmatpush1.msra.mxu0 0.0
    %924 = vmatprep.subr.mxu0 0.0
    %925 = vmatpush1.msra.mxu0 %v92
    %926 = vmatprep.subr.mxu0 0.0
    %927 = vmatpush1.msra.mxu0 %v91
    %928 = vmatprep.subr.mxu0 0.0
    %929 = vmatpush1.msra.mxu0 %v90
    %930 = vmatprep.subr.mxu0 0.0
    %931 = vmatpush1.msra.mxu0 %v89
    %932 = vmatprep.subr.mxu0 0.0
    %933 = vmatpush1.msra.mxu0 %v88
    %934 = vmatprep.subr.mxu0 0.0
    %935 = vmatpush1.msra.mxu0 %v87
    %936 = vmatprep.subr.mxu0 0.0
    %937 = vmatpush1.msra.mxu0 %v86
    %938 = vmatprep.subr.mxu0 0.0
    %939 = vmatpush1.msra.mxu0 %v85
    %940 = vmatprep.subr.mxu0 0.0
    %941 = vmatpush2.msra.mxu0 0.0
    %942 = vmatprep.subr.mxu0 0.0
    %943 = vmatpush2.msra.mxu0 0.0
    %944 = vmatprep.subr.mxu0 0.0
    %945 = vmatpush2.msra.mxu0 0.0
    %946 = vmatprep.subr.mxu0 0.0
    %947 = vmatpush2.msra.mxu0 0.0
    %948 = vmatprep.subr.mxu0 0.0
    %949 = vmatpush2.msra.mxu0 0.0
    %950 = vmatprep.subr.mxu0 0.0
    %951 = vmatpush2.msra.mxu0 0.0
    %952 = vmatprep.subr.mxu0 0.0
    %953 = vmatpush2.msra.mxu0 0.0
    %954 = vmatprep.subr.mxu0 0.0
    %955 = vmatpush2.msra.mxu0 0.0
    %956 = vmatprep.subr.mxu0 0.0
    %957 = vmatpush2.msra.mxu0 0.0
    %958 = vmatprep.subr.mxu0 0.0
    %959 = vmatpush2.msra.mxu0 0.0
    %960 = vmatprep.subr.mxu0 0.0
    %961 = vmatpush2.msra.mxu0 0.0
    %962 = vmatprep.subr.mxu0 0.0
    %963 = vmatpush2.msra.mxu0 0.0
    %964 = vmatprep.subr.mxu0 0.0
    %965 = vmatpush2.msra.mxu0 0.0
    %966 = vmatprep.subr.mxu0 0.0
    %967 = vmatpush2.msra.mxu0 0.0
    %968 = vmatprep.subr.mxu0 0.0
    %969 = vmatpush2.msra.mxu0 0.0
    %970 = vmatprep.subr.mxu0 0.0
    %971 = vmatpush2.msra.mxu0 0.0
    %972 = vmatprep.mubr.f32.mxu0 0.0
    %973 = vmatmul.mubr.f32.gmra.mxu0 %v897
    %v974 = vpop.f32.mrf.mxu0
    %v975 = vadd.f32 1e-05, %v974
    %v976 = vpop.f32.mrf.mxu0
    %977 = vmatprep.mubr.f32.mxu0 0.0
    %978 = vmatmul.mubr.f32.gmra.mxu0 %v900
    %v979 = vpop.f32.mrf.mxu0
    %v980 = vadd.f32 1e-05, %v979
    %v981 = vpop.f32.mrf.mxu0
    %982 = vmatprep.mubr.f32.mxu0 0.0
    %983 = vmatmul.mubr.f32.gmra.mxu0 %v903
    %v984 = vpop.f32.mrf.mxu0
    %v985 = vadd.f32 1e-05, %v984
    %v986 = vpop.f32.mrf.mxu0
    %987 = vmatprep.mubr.f32.mxu0 0.0
    %988 = vmatmul.mubr.f32.gmra.mxu0 %v906
    %v989 = vpop.f32.mrf.mxu0
    %v990 = vadd.f32 1e-05, %v989
    %v991 = vpop.f32.mrf.mxu0
    %992 = vdwg.mxu0
    %v993 = vrsqrt.pop %v975
    %v994 = vrsqrt.pop %v980
    %v995 = vrsqrt.pop %v985
    %v996 = vrsqrt.pop %v990
    %v997 = vmul.f32 %v888, %v993
    %v998 = vmul.f32 %v889, %v994
    %v999 = vmul.f32 %v890, %v995
    %v1000 = vmul.f32 %v891, %v996
    %v1001 = vld [vmem:[%s9] sm:$0x1]
    %v1003 = vlaneseq
    %v1004 = vshrl.u32 %v1003, 7
    %v1005 = vsub.s32 0, %v1004
    %v1006 = vrot.slane %v1001, %v1005
    %v1008 = vmul.f32 %v997, %v1006
    %v1009 = vmul.f32 %v998, %v1006
    %v1010 = vmul.f32 %v999, %v1006
    %v1011 = vmul.f32 %v1000, %v1006
    %v1012 = vld [vmem:[%s10] sm:$0x1]
    %v1014 = vlaneseq
    %v1015 = vshrl.u32 %v1014, 7
    %v1016 = vsub.s32 0, %v1015
    %v1017 = vrot.slane %v1012, %v1016
    %v1019 = vadd.f32 %v1008, %v1017
    %v1020 = vadd.f32 %v1009, %v1017
    %v1021 = vadd.f32 %v1010, %v1017
    %v1022 = vadd.f32 %v1011, %v1017
    %v1023 = vmul.f32 %v1019, 0.70710677
    %v1024 = vmul.f32 %v1020, 0.70710677
    %v1025 = vmul.f32 %v1021, 0.70710677
    %v1026 = vmul.f32 %v1022, 0.70710677
    %v1027 = vand.u32 2147483647, %v1023
    %v1028 = vand.u32 2147483647, %v1024
    %v1029 = vand.u32 2147483647, %v1025
    %v1030 = vand.u32 2147483647, %v1026
    %v1031 = vmul.f32 %v1027, 0.3275911
    %v1032 = vmul.f32 %v1028, 0.3275911
    %v1033 = vmul.f32 %v1029, 0.3275911
    %v1034 = vmul.f32 %v1030, 0.3275911
    %v1035 = vadd.f32 %v1031, 1.0
    %v1036 = vadd.f32 %v1032, 1.0
    %v1037 = vadd.f32 %v1033, 1.0
    %v1038 = vadd.f32 %v1034, 1.0
    %v1039 = vrcp.pop %v1035
    %v1040 = vrcp.pop %v1036
    %v1041 = vrcp.pop %v1037
    %v1042 = vrcp.pop %v1038
    %v1043 = vmul.f32 %v1039, 1.0614054
    %v1044 = vmul.f32 %v1040, 1.0614054
    %v1045 = vmul.f32 %v1041, 1.0614054
    %v1046 = vmul.f32 %v1042, 1.0614054
    %v1047 = vadd.f32 %v1043, -1.4531521
    %v1048 = vadd.f32 %v1044, -1.4531521
    %v1049 = vadd.f32 %v1045, -1.4531521
    %v1050 = vadd.f32 %v1046, -1.4531521
    %v1051 = vmul.f32 %v1039, %v1047
    %v1052 = vmul.f32 %v1040, %v1048
    %v1053 = vmul.f32 %v1041, %v1049
    %v1054 = vmul.f32 %v1042, %v1050
    %v1055 = vadd.f32 %v1051, 1.4214138
    %v1056 = vadd.f32 %v1052, 1.4214138
    %v1057 = vadd.f32 %v1053, 1.4214138
    %v1058 = vadd.f32 %v1054, 1.4214138
    %v1059 = vmul.f32 %v1039, %v1055
    %v1060 = vmul.f32 %v1040, %v1056
    %v1061 = vmul.f32 %v1041, %v1057
    %v1062 = vmul.f32 %v1042, %v1058
    %v1063 = vadd.f32 %v1059, -0.28449672
    %v1064 = vadd.f32 %v1060, -0.28449672
    %v1065 = vadd.f32 %v1061, -0.28449672
    %v1066 = vadd.f32 %v1062, -0.28449672
    %v1067 = vmul.f32 %v1039, %v1063
    %v1068 = vmul.f32 %v1040, %v1064
    %v1069 = vmul.f32 %v1041, %v1065
    %v1070 = vmul.f32 %v1042, %v1066
    %v1071 = vadd.f32 %v1067, 0.2548296
    %v1072 = vadd.f32 %v1068, 0.2548296
    %v1073 = vadd.f32 %v1069, 0.2548296
    %v1074 = vadd.f32 %v1070, 0.2548296
    %v1075 = vmul.f32 %v1039, %v1071
    %v1076 = vmul.f32 %v1040, %v1072
    %v1077 = vmul.f32 %v1041, %v1073
    %v1078 = vmul.f32 %v1042, %v1074
    %v1079 = vsub.f32 0.0, %v1027
    %v1080 = vsub.f32 0.0, %v1028
    %v1081 = vsub.f32 0.0, %v1029
    %v1082 = vsub.f32 0.0, %v1030
    %v1083 = vmul.f32 %v1079, %v1027
    %v1084 = vmul.f32 %v1080, %v1028
    %v1085 = vmul.f32 %v1081, %v1029
    %v1086 = vmul.f32 %v1082, %v1030
    %v1087 = vmul.f32 %v1083, 1.442695
    %v1088 = vpow.pop %v1087
    %v1089 = vmul.f32 %v1084, 1.442695
    %v1090 = vpow.pop %v1089
    %v1091 = vmul.f32 %v1085, 1.442695
    %v1092 = vpow.pop %v1091
    %v1093 = vmul.f32 %v1086, 1.442695
    %v1094 = vpow.pop %v1093
    %v1095 = vmul.f32 %v1075, %v1088
    %v1096 = vmul.f32 %v1076, %v1090
    %v1097 = vmul.f32 %v1077, %v1092
    %v1098 = vmul.f32 %v1078, %v1094
    %v1099 = vsub.f32 1.0, %v1095
    %v1100 = vsub.f32 1.0, %v1096
    %v1101 = vsub.f32 1.0, %v1097
    %v1102 = vsub.f32 1.0, %v1098
    %vm1103 = vcmp.ge.f32.partialorder %v1023, 0.0
    %vm1104 = vcmp.ge.f32.partialorder %v1024, 0.0
    %vm1105 = vcmp.ge.f32.partialorder %v1025, 0.0
    %vm1106 = vcmp.ge.f32.partialorder %v1026, 0.0
    %v1107 = vsub.f32 0.0, %v1099
    %v1108 = vsub.f32 0.0, %v1100
    %v1109 = vsub.f32 0.0, %v1101
    %v1110 = vsub.f32 0.0, %v1102
    %v1111 = vsel %vm1103, %v1099, %v1107
    %v1112 = vsel %vm1104, %v1100, %v1108
    %v1113 = vsel %vm1105, %v1101, %v1109
    %v1114 = vsel %vm1106, %v1102, %v1110
    %v1115 = vmul.f32 %v1019, 0.5
    %v1116 = vmul.f32 %v1020, 0.5
    %v1117 = vmul.f32 %v1021, 0.5
    %v1118 = vmul.f32 %v1022, 0.5
    %v1119 = vadd.f32 %v1111, 1.0
    %v1120 = vadd.f32 %v1112, 1.0
    %v1121 = vadd.f32 %v1113, 1.0
    %v1122 = vadd.f32 %v1114, 1.0
    %v1123 = vmul.f32 %v1115, %v1119
    %v1124 = vmul.f32 %v1116, %v1120
    %v1125 = vmul.f32 %v1117, %v1121
    %v1126 = vmul.f32 %v1118, %v1122
    %v1127 = vrot.slane %v1123, 7
    %v1128 = vrot.slane %v1124, 7
    %v1129 = vrot.slane %v1125, 7
    %v1130 = vrot.slane %v1126, 7
    %v1131 = vsel %vm436, %v1129, %v1130
    %v1132 = vsel %vm436, %v1128, %v1129
    %v1133 = vsel %vm436, %v1127, %v1128
    %v1134 = vsel %vm436, %v1130, %v1127
    %v1135 = vmul.f32 %v1134, %v448
    %v1136 = vmul.f32 %v1133, %v453
    %v1137 = vmul.f32 %v1132, %v458
    %v1138 = vmul.f32 %v1131, %v463
    %v1139 = vpack.c.bf16 %v1136, %v1135
    %v1140 = vpack.c.bf16 %v1138, %v1137
    %v1141 = vld [vmem:[#allocation7] sm:$0xf]
    %v1142 = vld [vmem:[#allocation7 + $0x4] sm:$0xf]
    %v1143 = vld [vmem:[#allocation7 + $0x8] sm:$0xf]
    %v1144 = vld [vmem:[#allocation7 + $0xc] sm:$0xf]
    %v1145 = vld [vmem:[#allocation7 + $0x10] sm:$0xf]
    %v1146 = vld [vmem:[#allocation7 + $0x14] sm:$0xf]
    %v1147 = vld [vmem:[#allocation7 + $0x18] sm:$0xf]
    %v1148 = vld [vmem:[#allocation7 + $0x1c] sm:$0xf]
    %v1149 = vpack.c.bf16 %v1124, %v1123
    %v1150 = vpack.c.bf16 %v1126, %v1125
    %s1151 = scalar_lea.vmem [#allocation7], 32
    %v1152 = vld [vmem:[%s1151] sm:$0xf]
    %v1153 = vld [vmem:[%s1151 + $0x4] sm:$0xf]
    %v1154 = vld [vmem:[%s1151 + $0x8] sm:$0xf]
    %v1155 = vld [vmem:[%s1151 + $0xc] sm:$0xf]
    %v1156 = vld [vmem:[%s1151 + $0x10] sm:$0xf]
    %v1157 = vld [vmem:[%s1151 + $0x14] sm:$0xf]
    %v1158 = vld [vmem:[%s1151 + $0x18] sm:$0xf]
    %v1159 = vld [vmem:[%s1151 + $0x1c] sm:$0xf]
    %v1168 = vunpack.c.l.b16 %v1152
    %v1169 = vunpack.c.l.b16 %v1153
    %v1170 = vunpack.c.l.b16 %v1154
    %v1171 = vunpack.c.l.b16 %v1155
    %v1172 = vunpack.c.l.b16 %v1156
    %v1173 = vunpack.c.l.b16 %v1157
    %v1174 = vunpack.c.l.b16 %v1158
    %v1175 = vunpack.c.l.b16 %v1159
    %v1176 = vpack.c.b16 %v1169, %v1168
    %v1177 = vpack.c.b16 %v1171, %v1170
    %v1178 = vpack.c.b16 %v1173, %v1172
    %v1179 = vpack.c.b16 %v1175, %v1174
    %v1185 = vsel %vm93, %v1149, 0
    %v1188 = vsel %vm93, %v1150, 0
    %1190 = vmatprep.subr.bf16.mxu0 0
    %1191 = vmatpush1.bf16.msra.mxu0 0
    %1192 = vmatprep.subr.bf16.mxu0 0
    %1193 = vmatpush1.bf16.msra.mxu0 0
    %1194 = vmatprep.subr.bf16.mxu0 0
    %1195 = vmatpush1.bf16.msra.mxu0 0
    %1196 = vmatprep.subr.bf16.mxu0 0
    %1197 = vmatpush1.bf16.msra.mxu0 0
    %1198 = vmatprep.subr.bf16.mxu0 0
    %1199 = vmatpush1.bf16.msra.mxu0 %v1179
    %1200 = vmatprep.subr.bf16.mxu0 0
    %1201 = vmatpush1.bf16.msra.mxu0 %v1178
    %1202 = vmatprep.subr.bf16.mxu0 0
    %1203 = vmatpush1.bf16.msra.mxu0 %v1177
    %1204 = vmatprep.subr.bf16.mxu0 0
    %1205 = vmatpush1.bf16.msra.mxu0 %v1176
    %1206 = vmatprep.subr.bf16.mxu0 0
    %1207 = vmatpush2.bf16.msra.mxu0 0
    %1208 = vmatprep.subr.bf16.mxu0 0
    %1209 = vmatpush2.bf16.msra.mxu0 0
    %1210 = vmatprep.subr.bf16.mxu0 0
    %1211 = vmatpush2.bf16.msra.mxu0 0
    %1212 = vmatprep.subr.bf16.mxu0 0
    %1213 = vmatpush2.bf16.msra.mxu0 0
    %1214 = vmatprep.subr.bf16.mxu0 0
    %1215 = vmatpush2.bf16.msra.mxu0 0
    %1216 = vmatprep.subr.bf16.mxu0 0
    %1217 = vmatpush2.bf16.msra.mxu0 0
    %1218 = vmatprep.subr.bf16.mxu0 0
    %1219 = vmatpush2.bf16.msra.mxu0 0
    %1220 = vmatprep.subr.bf16.mxu0 0
    %1221 = vmatpush2.bf16.msra.mxu0 0
    %1222 = vmatprep.mubr.bf16.mxu0 0
    %1223 = vmatmul.mubr.bf16.gmra.mxu0 %v1185
    %v1224 = vpop.f32.mrf.mxu0
    %v1225 = vadd.f32 0.0, %v1224
    %v1226 = vpop.f32.mrf.mxu0
    %v1227 = vpop.f32.mrf.mxu0
    %v1228 = vadd.f32 0.0, %v1227
    %v1229 = vpop.f32.mrf.mxu0
    %1230 = vmatprep.mubr.bf16.mxu0 0
    %1231 = vmatmul.mubr.bf16.gmra.mxu0 %v1188
    %v1232 = vpop.f32.mrf.mxu0
    %v1233 = vadd.f32 0.0, %v1232
    %v1234 = vpop.f32.mrf.mxu0
    %v1235 = vpop.f32.mrf.mxu0
    %v1236 = vadd.f32 0.0, %v1235
    %v1237 = vpop.f32.mrf.mxu0
    %1238 = vdwg.mxu0
    %v1247 = vunpack.c.l.b16 %v1141
    %v1248 = vunpack.c.l.b16 %v1142
    %v1249 = vunpack.c.l.b16 %v1143
    %v1250 = vunpack.c.l.b16 %v1144
    %v1251 = vunpack.c.l.b16 %v1145
    %v1252 = vunpack.c.l.b16 %v1146
    %v1253 = vunpack.c.l.b16 %v1147
    %v1254 = vunpack.c.l.b16 %v1148
    %v1255 = vpack.c.b16 %v1248, %v1247
    %v1256 = vpack.c.b16 %v1250, %v1249
    %v1257 = vpack.c.b16 %v1252, %v1251
    %v1258 = vpack.c.b16 %v1254, %v1253
    %v1264 = vsel %vm93, %v1139, 0
    %v1267 = vsel %vm93, %v1140, 0
    %1269 = vmatprep.subr.bf16.mxu0 0
    %1270 = vmatpush1.bf16.msra.mxu0 0
    %1271 = vmatprep.subr.bf16.mxu0 0
    %1272 = vmatpush1.bf16.msra.mxu0 0
    %1273 = vmatprep.subr.bf16.mxu0 0
    %1274 = vmatpush1.bf16.msra.mxu0 0
    %1275 = vmatprep.subr.bf16.mxu0 0
    %1276 = vmatpush1.bf16.msra.mxu0 0
    %1277 = vmatprep.subr.bf16.mxu0 0
    %1278 = vmatpush1.bf16.msra.mxu0 %v1258
    %1279 = vmatprep.subr.bf16.mxu0 0
    %1280 = vmatpush1.bf16.msra.mxu0 %v1257
    %1281 = vmatprep.subr.bf16.mxu0 0
    %1282 = vmatpush1.bf16.msra.mxu0 %v1256
    %1283 = vmatprep.subr.bf16.mxu0 0
    %1284 = vmatpush1.bf16.msra.mxu0 %v1255
    %1285 = vmatprep.subr.bf16.mxu0 0
    %1286 = vmatpush2.bf16.msra.mxu0 0
    %1287 = vmatprep.subr.bf16.mxu0 0
    %1288 = vmatpush2.bf16.msra.mxu0 0
    %1289 = vmatprep.subr.bf16.mxu0 0
    %1290 = vmatpush2.bf16.msra.mxu0 0
    %1291 = vmatprep.subr.bf16.mxu0 0
    %1292 = vmatpush2.bf16.msra.mxu0 0
    %1293 = vmatprep.subr.bf16.mxu0 0
    %1294 = vmatpush2.bf16.msra.mxu0 0
    %1295 = vmatprep.subr.bf16.mxu0 0
    %1296 = vmatpush2.bf16.msra.mxu0 0
    %1297 = vmatprep.subr.bf16.mxu0 0
    %1298 = vmatpush2.bf16.msra.mxu0 0
    %1299 = vmatprep.subr.bf16.mxu0 0
    %1300 = vmatpush2.bf16.msra.mxu0 0
    %1301 = vmatprep.mubr.bf16.mxu0 0
    %1302 = vmatmul.mubr.bf16.gmra.mxu0 %v1264
    %v1303 = vpop.f32.mrf.mxu0
    %v1304 = vadd.f32 %v1225, %v1303
    %v1305 = vpop.f32.mrf.mxu0
    %v1306 = vpop.f32.mrf.mxu0
    %v1307 = vadd.f32 %v1228, %v1306
    %v1308 = vpop.f32.mrf.mxu0
    %1309 = vmatprep.mubr.bf16.mxu0 0
    %1310 = vmatmul.mubr.bf16.gmra.mxu0 %v1267
    %v1311 = vpop.f32.mrf.mxu0
    %v1312 = vadd.f32 %v1233, %v1311
    %v1313 = vpop.f32.mrf.mxu0
    %v1314 = vpop.f32.mrf.mxu0
    %v1315 = vadd.f32 %v1236, %v1314
    %v1316 = vpop.f32.mrf.mxu0
    %1317 = vdwg.mxu0
    %v1318 = vrot.slane %v1123, 1
    %v1319 = vrot.slane %v1124, 1
    %v1320 = vrot.slane %v1125, 1
    %v1321 = vrot.slane %v1126, 1
    %v1322 = vsel %vm652, %v1320, %v1321
    %v1323 = vsel %vm652, %v1319, %v1320
    %v1324 = vsel %vm652, %v1318, %v1319
    %v1325 = vsel %vm652, %v1321, %v1318
    %v1326 = vmul.f32 %v1324, %v665
    %v1327 = vmul.f32 %v1323, %v670
    %v1328 = vmul.f32 %v1322, %v675
    %v1329 = vmul.f32 %v1325, %v680
    %v1330 = vpack.c.bf16 %v1327, %v1326
    %v1331 = vpack.c.bf16 %v1329, %v1328
    %s1332 = scalar_lea.vmem [#allocation7], 64
    %v1333 = vld [vmem:[%s1332] sm:$0xf]
    %v1334 = vld [vmem:[%s1332 + $0x4] sm:$0xf]
    %v1335 = vld [vmem:[%s1332 + $0x8] sm:$0xf]
    %v1336 = vld [vmem:[%s1332 + $0xc] sm:$0xf]
    %v1337 = vld [vmem:[%s1332 + $0x10] sm:$0xf]
    %v1338 = vld [vmem:[%s1332 + $0x14] sm:$0xf]
    %v1339 = vld [vmem:[%s1332 + $0x18] sm:$0xf]
    %v1340 = vld [vmem:[%s1332 + $0x1c] sm:$0xf]
    %v1349 = vunpack.c.l.b16 %v1333
    %v1350 = vunpack.c.l.b16 %v1334
    %v1351 = vunpack.c.l.b16 %v1335
    %v1352 = vunpack.c.l.b16 %v1336
    %v1353 = vunpack.c.l.b16 %v1337
    %v1354 = vunpack.c.l.b16 %v1338
    %v1355 = vunpack.c.l.b16 %v1339
    %v1356 = vunpack.c.l.b16 %v1340
    %v1357 = vpack.c.b16 %v1350, %v1349
    %v1358 = vpack.c.b16 %v1352, %v1351
    %v1359 = vpack.c.b16 %v1354, %v1353
    %v1360 = vpack.c.b16 %v1356, %v1355
    %v1366 = vsel %vm93, %v1330, 0
    %v1369 = vsel %vm93, %v1331, 0
    %1371 = vmatprep.subr.bf16.mxu0 0
    %1372 = vmatpush1.bf16.msra.mxu0 0
    %1373 = vmatprep.subr.bf16.mxu0 0
    %1374 = vmatpush1.bf16.msra.mxu0 0
    %1375 = vmatprep.subr.bf16.mxu0 0
    %1376 = vmatpush1.bf16.msra.mxu0 0
    %1377 = vmatprep.subr.bf16.mxu0 0
    %1378 = vmatpush1.bf16.msra.mxu0 0
    %1379 = vmatprep.subr.bf16.mxu0 0
    %1380 = vmatpush1.bf16.msra.mxu0 %v1360
    %1381 = vmatprep.subr.bf16.mxu0 0
    %1382 = vmatpush1.bf16.msra.mxu0 %v1359
    %1383 = vmatprep.subr.bf16.mxu0 0
    %1384 = vmatpush1.bf16.msra.mxu0 %v1358
    %1385 = vmatprep.subr.bf16.mxu0 0
    %1386 = vmatpush1.bf16.msra.mxu0 %v1357
    %1387 = vmatprep.subr.bf16.mxu0 0
    %1388 = vmatpush2.bf16.msra.mxu0 0
    %1389 = vmatprep.subr.bf16.mxu0 0
    %1390 = vmatpush2.bf16.msra.mxu0 0
    %1391 = vmatprep.subr.bf16.mxu0 0
    %1392 = vmatpush2.bf16.msra.mxu0 0
    %1393 = vmatprep.subr.bf16.mxu0 0
    %1394 = vmatpush2.bf16.msra.mxu0 0
    %1395 = vmatprep.subr.bf16.mxu0 0
    %1396 = vmatpush2.bf16.msra.mxu0 0
    %1397 = vmatprep.subr.bf16.mxu0 0
    %1398 = vmatpush2.bf16.msra.mxu0 0
    %1399 = vmatprep.subr.bf16.mxu0 0
    %1400 = vmatpush2.bf16.msra.mxu0 0
    %1401 = vmatprep.subr.bf16.mxu0 0
    %1402 = vmatpush2.bf16.msra.mxu0 0
    %1403 = vmatprep.mubr.bf16.mxu0 0
    %1404 = vmatmul.mubr.bf16.gmra.mxu0 %v1366
    %v1405 = vpop.f32.mrf.mxu0
    %v1406 = vadd.f32 0.0, %v1405
    %v1407 = vpop.f32.mrf.mxu0
    %v1408 = vpop.f32.mrf.mxu0
    %v1409 = vadd.f32 0.0, %v1408
    %v1410 = vpop.f32.mrf.mxu0
    %1411 = vmatprep.mubr.bf16.mxu0 0
    %1412 = vmatmul.mubr.bf16.gmra.mxu0 %v1369
    %v1413 = vpop.f32.mrf.mxu0
    %v1414 = vadd.f32 0.0, %v1413
    %v1415 = vpop.f32.mrf.mxu0
    %v1416 = vpop.f32.mrf.mxu0
    %v1417 = vadd.f32 0.0, %v1416
    %v1418 = vpop.f32.mrf.mxu0
    %1419 = vdwg.mxu0
    %v1420 = vadd.f32 %v1304, %v1406
    %v1421 = vadd.f32 %v1307, %v1409
    %v1422 = vadd.f32 %v1312, %v1414
    %v1423 = vadd.f32 %v1315, %v1417
    %v1424 = vld [vmem:[%s8] sm:$0x1]
    %v1426 = vlaneseq
    %v1427 = vshrl.u32 %v1426, 7
    %v1428 = vsub.s32 0, %v1427
    %v1429 = vrot.slane %v1424, %v1428
    %v1431 = vadd.f32 %v1420, %v1429
    %v1432 = vadd.f32 %v1421, %v1429
    %v1433 = vadd.f32 %v1422, %v1429
    %v1434 = vadd.f32 %v1423, %v1429
    %v1435 = vadd.f32 %v1431, %v81
    %v1436 = vadd.f32 %v1432, %v82
    %v1437 = vadd.f32 %v1433, %v83
    %v1438 = vadd.f32 %v1434, %v84
    %1439 = vst.msk [vmem:[#allocation8] sm:$0xff] %vm93, %v1435
    %1440 = vst.msk [vmem:[#allocation8 + $0x8] sm:$0xff] %vm93, %v1436
    %1441 = vst.msk [vmem:[#allocation8 + $0x10] sm:$0xff] %vm93, %v1437
    %1442 = vst.msk [vmem:[#allocation8 + $0x18] sm:$0xff] %vm93, %v1438
    // Predicated region
    $region58: #{tpu_custom_call.1} parent=1 // pred_check
      _
    $region59: #{tpu_custom_call.1} parent=1 // pred_check_branch
      %1444 = sbr.rel (0) target = $region61
    $region60: #{tpu_custom_call.1} parent=1 // pred_region
      %s1446 = ssub.s32 512, 512
      %1447 = vsyncadd [#allocation4], %s1446
      %s1448 = sshll.u32 [#allocation8], 4
      %s1449 = int_to_ptr.vmem [resolvable:$true] %s1448
      %1454 = dma.vmem_to_hbm [thread:$0]  %s1449, 512, %s11, [#allocation4], 128, 128, 8
    $region61: #{tpu_custom_call.1} parent=1 // pred_fallthru
      _
    // Predicated region
    $region62: #{tpu_custom_call.1} parent=1 // pred_check
      _
    $region63: #{tpu_custom_call.1} parent=1 // pred_check_branch
      %1456 = sbr.rel (0) target = $region65
    $region64: #{tpu_custom_call.1} parent=1 // pred_region
      %1457 = dma.done [#allocation4], 512
    $region65: #{tpu_custom_call.1} parent=1 // pred_fallthru
      _
    %1458 = vsyncpa [#allocation3], 1
    %1459 = vsyncpa [#allocation6], 1
    %1460 = vsyncpa [#allocation4], 1

</llo_original>
